<compile_context>
chip_gen: v6e
topology: v6e:2x2x1
jax: 0.10.0
libtpu: 0.0.40
codegen_flags: <defaults>
</compile_context>

<pallas_src>
import functools
import math

import jax
import jax.numpy as jnp
from jax.experimental import pallas as pl
from jax.experimental.pallas import tpu as pltpu


def _mhsa_kernel(x_ref, wq_ref, wk_ref, wv_ref, bq_ref, bk_ref, bv_ref, o_ref,
                 *, n_heads, scale):
    # x_ref: (1, S, D); w*_ref: (D, D) pre-transposed so y = x @ w + b;
    # b*_ref: (1, D); o_ref: (1, S, D).
    x = x_ref[0].astype(jnp.float32)                       # (S, D)

    wq = wq_ref[...].astype(jnp.float32)
    wk = wk_ref[...].astype(jnp.float32)
    wv = wv_ref[...].astype(jnp.float32)
    bq = bq_ref[...].astype(jnp.float32)                   # (1, D) broadcasts
    bk = bk_ref[...].astype(jnp.float32)
    bv = bv_ref[...].astype(jnp.float32)

    # QKV projections on the MXU, fused in-kernel (q/k/v never touch HBM).
    q = jnp.dot(x, wq, preferred_element_type=jnp.float32) + bq   # (S, D)
    k = jnp.dot(x, wk, preferred_element_type=jnp.float32) + bk
    v = jnp.dot(x, wv, preferred_element_type=jnp.float32) + bv

    d = q.shape[-1]
    w = d // n_heads
    head_outs = []
    for h in range(n_heads):                               # static unrolled loop
        lo, hi = h * w, (h + 1) * w
        qh = q[:, lo:hi]                                   # (S, W)
        kh = k[:, lo:hi]
        vh = v[:, lo:hi]
        s = jnp.dot(qh, kh.T, preferred_element_type=jnp.float32) * scale  # (S, S)
        s = s - jnp.max(s, axis=-1, keepdims=True)         # stable softmax
        p = jnp.exp(s)
        p = p / jnp.sum(p, axis=-1, keepdims=True)
        head_outs.append(jnp.dot(p, vh, preferred_element_type=jnp.float32))

    # Single lane-dense store of the merged heads (full-block, unmasked vst).
    o_ref[0] = jnp.concatenate(head_outs, axis=-1).astype(o_ref.dtype)


def multi_headed_self_attention(x, wq, bq, wk, bk, wv, bv, n_heads, mask=None):
    """x: [B, S, D].  wq/wk/wv: [D, D] in PyTorch Linear layout (out, in);
    bq/bk/bv: [D].  `mask` is accepted but unused (the PyTorch forward never
    applies it)."""
    del mask  # unused, matching the reference forward
    B, S, D = x.shape
    assert D % n_heads == 0, "hidden must be divisible by n_heads"
    head_w = D // n_heads
    scale = 1.0 / math.sqrt(head_w)

    # Pre-transpose weights once in the wrapper so the kernel does x @ w + b.
    wq_t, wk_t, wv_t = wq.T, wk.T, wv.T
    bq2, bk2, bv2 = bq.reshape(1, D), bk.reshape(1, D), bv.reshape(1, D)

    kernel = functools.partial(_mhsa_kernel, n_heads=n_heads, scale=scale)

    out = pl.pallas_call(
        kernel,
        out_shape=jax.ShapeDtypeStruct((B, S, D), x.dtype),
        grid_spec=pl.GridSpec(
            grid=(B,),
            in_specs=[
                pl.BlockSpec((1, S, D), lambda b: (b, 0, 0)),   # x (per batch)
                pl.BlockSpec((D, D), lambda b: (0, 0)),          # wq (resident)
                pl.BlockSpec((D, D), lambda b: (0, 0)),          # wk
                pl.BlockSpec((D, D), lambda b: (0, 0)),          # wv
                pl.BlockSpec((1, D), lambda b: (0, 0)),          # bq
                pl.BlockSpec((1, D), lambda b: (0, 0)),          # bk
                pl.BlockSpec((1, D), lambda b: (0, 0)),          # bv
            ],
            out_specs=pl.BlockSpec((1, S, D), lambda b: (b, 0, 0)),
        ),
        compiler_params=pltpu.CompilerParams(
            dimension_semantics=("parallel",),
        ),
    )(x, wq_t, wk_t, wv_t, bq2, bk2, bv2)
    return out


if __name__ == "__main__":
    # cfg.hidden = 32, cfg.n_heads = 4, batch = 2, seq = 8
    batch, seq, hidden, n_heads = 2, 8, 32, 4

    key = jax.random.PRNGKey(0)
    kx, kwq, kwk, kwv, kbq, kbk, kbv = jax.random.split(key, 7)
    x = jax.random.normal(kx, (batch, seq, hidden), dtype=jnp.float32)

    bound = 1.0 / math.sqrt(hidden)   # nn.Linear-style uniform init bound
    wq = jax.random.uniform(kwq, (hidden, hidden), jnp.float32, -bound, bound)
    wk = jax.random.uniform(kwk, (hidden, hidden), jnp.float32, -bound, bound)
    wv = jax.random.uniform(kwv, (hidden, hidden), jnp.float32, -bound, bound)
    bq = jax.random.uniform(kbq, (hidden,), jnp.float32, -bound, bound)
    bk = jax.random.uniform(kbk, (hidden,), jnp.float32, -bound, bound)
    bv = jax.random.uniform(kbv, (hidden,), jnp.float32, -bound, bound)
    mask = jnp.ones((batch, seq), dtype=jnp.float32)   # unused by the forward

    out = multi_headed_self_attention(x, wq, bq, wk, bk, wv, bv, n_heads, mask)
    out = jax.block_until_ready(out)

    # Pure-JAX reference (same math as the PyTorch forward).
    q = x @ wq.T + bq
    k = x @ wk.T + bk
    v = x @ wv.T + bv

    def split_heads(t):
        return t.reshape(batch, seq, n_heads, hidden // n_heads).transpose(0, 2, 1, 3)

    qh, kh, vh = split_heads(q), split_heads(k), split_heads(v)
    s = (qh @ kh.transpose(0, 1, 3, 2)) / math.sqrt(hidden // n_heads)
    p = jax.nn.softmax(s, axis=-1)
    ref = (p @ vh).transpose(0, 2, 1, 3).reshape(batch, seq, hidden)

    assert jnp.allclose(out, ref, atol=1e-5, rtol=1e-5), float(
        jnp.max(jnp.abs(out - ref)))

    print("KERNEL_OK")
</pallas_src>

<mosaic_0001>
module attributes {stable_mosaic.version = 11 : i64} {
  func.func @_mhsa_kernel(%arg0: i32, %arg1: memref<1x8x32xf32, #tpu.memory_space<vmem>>, %arg2: memref<32x32xf32, #tpu.memory_space<vmem>>, %arg3: memref<32x32xf32, #tpu.memory_space<vmem>>, %arg4: memref<32x32xf32, #tpu.memory_space<vmem>>, %arg5: memref<1x32xf32, #tpu.memory_space<vmem>>, %arg6: memref<1x32xf32, #tpu.memory_space<vmem>>, %arg7: memref<1x32xf32, #tpu.memory_space<vmem>>, %arg8: memref<1x8x32xf32, #tpu.memory_space<vmem>>) attributes {dimension_semantics = [#tpu.dimension_semantics<parallel>], iteration_bounds = array<i64: 2>, scalar_prefetch = 0 : i64, scratch_operands = 0 : i64, tpu.core_type = #tpu.core_type<tc>, window_params = [{transform_indices = @transform_0, window_bounds = array<i64: 1, 8, 32>}, {pipeline_mode = #tpu.pipeline_mode<synchronous>, transform_indices = @transform_1, window_bounds = array<i64: 32, 32>}, {pipeline_mode = #tpu.pipeline_mode<synchronous>, transform_indices = @transform_2, window_bounds = array<i64: 32, 32>}, {pipeline_mode = #tpu.pipeline_mode<synchronous>, transform_indices = @transform_3, window_bounds = array<i64: 32, 32>}, {pipeline_mode = #tpu.pipeline_mode<synchronous>, transform_indices = @transform_4, window_bounds = array<i64: 1, 32>}, {pipeline_mode = #tpu.pipeline_mode<synchronous>, transform_indices = @transform_5, window_bounds = array<i64: 1, 32>}, {pipeline_mode = #tpu.pipeline_mode<synchronous>, transform_indices = @transform_6, window_bounds = array<i64: 1, 32>}, {transform_indices = @transform_7, window_bounds = array<i64: 1, 8, 32>}]} {
    %c0 = arith.constant 0 : index
    %c0_0 = arith.constant 0 : index
    %c0_1 = arith.constant 0 : index
    %0 = vector.load %arg1[%c0, %c0_0, %c0_1] : memref<1x8x32xf32, #tpu.memory_space<vmem>>, vector<1x8x32xf32>
    %1 = vector.shape_cast %0 : vector<1x8x32xf32> to vector<8x32xf32>
    %c0_2 = arith.constant 0 : index
    %c0_3 = arith.constant 0 : index
    %2 = vector.load %arg2[%c0_2, %c0_3] : memref<32x32xf32, #tpu.memory_space<vmem>>, vector<32x32xf32>
    %c0_4 = arith.constant 0 : index
    %c0_5 = arith.constant 0 : index
    %3 = vector.load %arg3[%c0_4, %c0_5] : memref<32x32xf32, #tpu.memory_space<vmem>>, vector<32x32xf32>
    %c0_6 = arith.constant 0 : index
    %c0_7 = arith.constant 0 : index
    %4 = vector.load %arg4[%c0_6, %c0_7] : memref<32x32xf32, #tpu.memory_space<vmem>>, vector<32x32xf32>
    %c0_8 = arith.constant 0 : index
    %c0_9 = arith.constant 0 : index
    %5 = vector.load %arg5[%c0_8, %c0_9] : memref<1x32xf32, #tpu.memory_space<vmem>>, vector<1x32xf32>
    %c0_10 = arith.constant 0 : index
    %c0_11 = arith.constant 0 : index
    %6 = vector.load %arg6[%c0_10, %c0_11] : memref<1x32xf32, #tpu.memory_space<vmem>>, vector<1x32xf32>
    %c0_12 = arith.constant 0 : index
    %c0_13 = arith.constant 0 : index
    %7 = vector.load %arg7[%c0_12, %c0_13] : memref<1x32xf32, #tpu.memory_space<vmem>>, vector<1x32xf32>
    %cst = arith.constant dense<0.000000e+00> : vector<8x32xf32>
    %8 = tpu.matmul %1, %2, %cst {dimension_numbers = #tpu.dot_dimension_numbers<[1], [0], [0], [1], [0, 0, 1, 1], [], []>} : vector<8x32xf32>, vector<32x32xf32>, vector<8x32xf32> -> vector<8x32xf32>
    %9 = vector.broadcast %5 : vector<1x32xf32> to vector<8x32xf32>
    %10 = arith.addf %8, %9 : vector<8x32xf32>
    %cst_14 = arith.constant dense<0.000000e+00> : vector<8x32xf32>
    %11 = tpu.matmul %1, %3, %cst_14 {dimension_numbers = #tpu.dot_dimension_numbers<[1], [0], [0], [1], [0, 0, 1, 1], [], []>} : vector<8x32xf32>, vector<32x32xf32>, vector<8x32xf32> -> vector<8x32xf32>
    %12 = vector.broadcast %6 : vector<1x32xf32> to vector<8x32xf32>
    %13 = arith.addf %11, %12 : vector<8x32xf32>
    %cst_15 = arith.constant dense<0.000000e+00> : vector<8x32xf32>
    %14 = tpu.matmul %1, %4, %cst_15 {dimension_numbers = #tpu.dot_dimension_numbers<[1], [0], [0], [1], [0, 0, 1, 1], [], []>} : vector<8x32xf32>, vector<32x32xf32>, vector<8x32xf32> -> vector<8x32xf32>
    %15 = vector.broadcast %7 : vector<1x32xf32> to vector<8x32xf32>
    %16 = arith.addf %14, %15 : vector<8x32xf32>
    %17 = vector.extract_strided_slice %10 {offsets = [0, 0], sizes = [8, 8], strides = [1, 1]} : vector<8x32xf32> to vector<8x8xf32>
    %18 = vector.extract_strided_slice %13 {offsets = [0, 0], sizes = [8, 8], strides = [1, 1]} : vector<8x32xf32> to vector<8x8xf32>
    %19 = vector.extract_strided_slice %16 {offsets = [0, 0], sizes = [8, 8], strides = [1, 1]} : vector<8x32xf32> to vector<8x8xf32>
    %20 = tpu.transpose %18, [1, 0] : vector<8x8xf32> -> vector<8x8xf32>
    %cst_16 = arith.constant dense<0.000000e+00> : vector<8x8xf32>
    %21 = tpu.matmul %17, %20, %cst_16 {dimension_numbers = #tpu.dot_dimension_numbers<[1], [0], [0], [1], [0, 0, 1, 1], [], []>} : vector<8x8xf32>, vector<8x8xf32>, vector<8x8xf32> -> vector<8x8xf32>
    %cst_17 = arith.constant 0.353553385 : f32
    %22 = vector.broadcast %cst_17 : f32 to vector<8x8xf32>
    %23 = arith.mulf %21, %22 : vector<8x8xf32>
    %cst_18 = arith.constant dense<0xFF800000> : vector<8xf32>
    %24 = vector.multi_reduction <maximumf>, %23, %cst_18 [1] : vector<8x8xf32> to vector<8xf32>
    %25 = vector.shape_cast %24 : vector<8xf32> to vector<8x1xf32>
    %26 = vector.broadcast %25 : vector<8x1xf32> to vector<8x8xf32>
    %27 = arith.subf %23, %26 : vector<8x8xf32>
    %28 = math.exp %27 : vector<8x8xf32>
    %cst_19 = arith.constant dense<0.000000e+00> : vector<8xf32>
    %29 = vector.multi_reduction <add>, %28, %cst_19 [1] : vector<8x8xf32> to vector<8xf32>
    %30 = vector.shape_cast %29 : vector<8xf32> to vector<8x1xf32>
    %31 = vector.broadcast %30 : vector<8x1xf32> to vector<8x8xf32>
    %32 = arith.divf %28, %31 : vector<8x8xf32>
    %cst_20 = arith.constant dense<0.000000e+00> : vector<8x8xf32>
    %33 = tpu.matmul %32, %19, %cst_20 {dimension_numbers = #tpu.dot_dimension_numbers<[1], [0], [0], [1], [0, 0, 1, 1], [], []>} : vector<8x8xf32>, vector<8x8xf32>, vector<8x8xf32> -> vector<8x8xf32>
    %34 = vector.extract_strided_slice %10 {offsets = [0, 8], sizes = [8, 8], strides = [1, 1]} : vector<8x32xf32> to vector<8x8xf32>
    %35 = vector.extract_strided_slice %13 {offsets = [0, 8], sizes = [8, 8], strides = [1, 1]} : vector<8x32xf32> to vector<8x8xf32>
    %36 = vector.extract_strided_slice %16 {offsets = [0, 8], sizes = [8, 8], strides = [1, 1]} : vector<8x32xf32> to vector<8x8xf32>
    %37 = tpu.transpose %35, [1, 0] : vector<8x8xf32> -> vector<8x8xf32>
    %cst_21 = arith.constant dense<0.000000e+00> : vector<8x8xf32>
    %38 = tpu.matmul %34, %37, %cst_21 {dimension_numbers = #tpu.dot_dimension_numbers<[1], [0], [0], [1], [0, 0, 1, 1], [], []>} : vector<8x8xf32>, vector<8x8xf32>, vector<8x8xf32> -> vector<8x8xf32>
    %cst_22 = arith.constant 0.353553385 : f32
    %39 = vector.broadcast %cst_22 : f32 to vector<8x8xf32>
    %40 = arith.mulf %38, %39 : vector<8x8xf32>
    %cst_23 = arith.constant dense<0xFF800000> : vector<8xf32>
    %41 = vector.multi_reduction <maximumf>, %40, %cst_23 [1] : vector<8x8xf32> to vector<8xf32>
    %42 = vector.shape_cast %41 : vector<8xf32> to vector<8x1xf32>
    %43 = vector.broadcast %42 : vector<8x1xf32> to vector<8x8xf32>
    %44 = arith.subf %40, %43 : vector<8x8xf32>
    %45 = math.exp %44 : vector<8x8xf32>
    %cst_24 = arith.constant dense<0.000000e+00> : vector<8xf32>
    %46 = vector.multi_reduction <add>, %45, %cst_24 [1] : vector<8x8xf32> to vector<8xf32>
    %47 = vector.shape_cast %46 : vector<8xf32> to vector<8x1xf32>
    %48 = vector.broadcast %47 : vector<8x1xf32> to vector<8x8xf32>
    %49 = arith.divf %45, %48 : vector<8x8xf32>
    %cst_25 = arith.constant dense<0.000000e+00> : vector<8x8xf32>
    %50 = tpu.matmul %49, %36, %cst_25 {dimension_numbers = #tpu.dot_dimension_numbers<[1], [0], [0], [1], [0, 0, 1, 1], [], []>} : vector<8x8xf32>, vector<8x8xf32>, vector<8x8xf32> -> vector<8x8xf32>
    %51 = vector.extract_strided_slice %10 {offsets = [0, 16], sizes = [8, 8], strides = [1, 1]} : vector<8x32xf32> to vector<8x8xf32>
    %52 = vector.extract_strided_slice %13 {offsets = [0, 16], sizes = [8, 8], strides = [1, 1]} : vector<8x32xf32> to vector<8x8xf32>
    %53 = vector.extract_strided_slice %16 {offsets = [0, 16], sizes = [8, 8], strides = [1, 1]} : vector<8x32xf32> to vector<8x8xf32>
    %54 = tpu.transpose %52, [1, 0] : vector<8x8xf32> -> vector<8x8xf32>
    %cst_26 = arith.constant dense<0.000000e+00> : vector<8x8xf32>
    %55 = tpu.matmul %51, %54, %cst_26 {dimension_numbers = #tpu.dot_dimension_numbers<[1], [0], [0], [1], [0, 0, 1, 1], [], []>} : vector<8x8xf32>, vector<8x8xf32>, vector<8x8xf32> -> vector<8x8xf32>
    %cst_27 = arith.constant 0.353553385 : f32
    %56 = vector.broadcast %cst_27 : f32 to vector<8x8xf32>
    %57 = arith.mulf %55, %56 : vector<8x8xf32>
    %cst_28 = arith.constant dense<0xFF800000> : vector<8xf32>
    %58 = vector.multi_reduction <maximumf>, %57, %cst_28 [1] : vector<8x8xf32> to vector<8xf32>
    %59 = vector.shape_cast %58 : vector<8xf32> to vector<8x1xf32>
    %60 = vector.broadcast %59 : vector<8x1xf32> to vector<8x8xf32>
    %61 = arith.subf %57, %60 : vector<8x8xf32>
    %62 = math.exp %61 : vector<8x8xf32>
    %cst_29 = arith.constant dense<0.000000e+00> : vector<8xf32>
    %63 = vector.multi_reduction <add>, %62, %cst_29 [1] : vector<8x8xf32> to vector<8xf32>
    %64 = vector.shape_cast %63 : vector<8xf32> to vector<8x1xf32>
    %65 = vector.broadcast %64 : vector<8x1xf32> to vector<8x8xf32>
    %66 = arith.divf %62, %65 : vector<8x8xf32>
    %cst_30 = arith.constant dense<0.000000e+00> : vector<8x8xf32>
    %67 = tpu.matmul %66, %53, %cst_30 {dimension_numbers = #tpu.dot_dimension_numbers<[1], [0], [0], [1], [0, 0, 1, 1], [], []>} : vector<8x8xf32>, vector<8x8xf32>, vector<8x8xf32> -> vector<8x8xf32>
    %68 = vector.extract_strided_slice %10 {offsets = [0, 24], sizes = [8, 8], strides = [1, 1]} : vector<8x32xf32> to vector<8x8xf32>
    %69 = vector.extract_strided_slice %13 {offsets = [0, 24], sizes = [8, 8], strides = [1, 1]} : vector<8x32xf32> to vector<8x8xf32>
    %70 = vector.extract_strided_slice %16 {offsets = [0, 24], sizes = [8, 8], strides = [1, 1]} : vector<8x32xf32> to vector<8x8xf32>
    %71 = tpu.transpose %69, [1, 0] : vector<8x8xf32> -> vector<8x8xf32>
    %cst_31 = arith.constant dense<0.000000e+00> : vector<8x8xf32>
    %72 = tpu.matmul %68, %71, %cst_31 {dimension_numbers = #tpu.dot_dimension_numbers<[1], [0], [0], [1], [0, 0, 1, 1], [], []>} : vector<8x8xf32>, vector<8x8xf32>, vector<8x8xf32> -> vector<8x8xf32>
    %cst_32 = arith.constant 0.353553385 : f32
    %73 = vector.broadcast %cst_32 : f32 to vector<8x8xf32>
    %74 = arith.mulf %72, %73 : vector<8x8xf32>
    %cst_33 = arith.constant dense<0xFF800000> : vector<8xf32>
    %75 = vector.multi_reduction <maximumf>, %74, %cst_33 [1] : vector<8x8xf32> to vector<8xf32>
    %76 = vector.shape_cast %75 : vector<8xf32> to vector<8x1xf32>
    %77 = vector.broadcast %76 : vector<8x1xf32> to vector<8x8xf32>
    %78 = arith.subf %74, %77 : vector<8x8xf32>
    %79 = math.exp %78 : vector<8x8xf32>
    %cst_34 = arith.constant dense<0.000000e+00> : vector<8xf32>
    %80 = vector.multi_reduction <add>, %79, %cst_34 [1] : vector<8x8xf32> to vector<8xf32>
    %81 = vector.shape_cast %80 : vector<8xf32> to vector<8x1xf32>
    %82 = vector.broadcast %81 : vector<8x1xf32> to vector<8x8xf32>
    %83 = arith.divf %79, %82 : vector<8x8xf32>
    %cst_35 = arith.constant dense<0.000000e+00> : vector<8x8xf32>
    %84 = tpu.matmul %83, %70, %cst_35 {dimension_numbers = #tpu.dot_dimension_numbers<[1], [0], [0], [1], [0, 0, 1, 1], [], []>} : vector<8x8xf32>, vector<8x8xf32>, vector<8x8xf32> -> vector<8x8xf32>
    %85 = tpu.concatenate %33, %50, %67, %84 in 1 : vector<8x8xf32>, vector<8x8xf32>, vector<8x8xf32>, vector<8x8xf32> -> vector<8x32xf32>
    %c0_36 = arith.constant 0 : index
    %c0_37 = arith.constant 0 : index
    %c0_38 = arith.constant 0 : index
    %86 = vector.load %arg8[%c0_36, %c0_37, %c0_38] : memref<1x8x32xf32, #tpu.memory_space<vmem>>, vector<1x8x32xf32>
    %87 = vector.shape_cast %86 : vector<1x8x32xf32> to vector<8x32xf32>
    %88 = vector.shape_cast %85 : vector<8x32xf32> to vector<1x8x32xf32>
    tpu.vector_store %arg8[%c0_36, %c0_37, %c0_38], %88 {strides = array<i32>} : memref<1x8x32xf32, #tpu.memory_space<vmem>>, vector<1x8x32xf32>,
    return
  }
  func.func @transform_0(%arg0: i32) -> (i32, i32, i32) {
    %c0_i32 = arith.constant 0 : i32
    %c0_i32_0 = arith.constant 0 : i32
    %c0_i32_1 = arith.constant 0 : i32
    return %arg0, %c0_i32, %c0_i32_0 : i32, i32, i32
  }
  func.func @transform_1(%arg0: i32) -> (i32, i32) {
    %c0_i32 = arith.constant 0 : i32
    %c0_i32_0 = arith.constant 0 : i32
    %c0_i32_1 = arith.constant 0 : i32
    return %c0_i32, %c0_i32_0 : i32, i32
  }
  func.func @transform_2(%arg0: i32) -> (i32, i32) {
    %c0_i32 = arith.constant 0 : i32
    %c0_i32_0 = arith.constant 0 : i32
    %c0_i32_1 = arith.constant 0 : i32
    return %c0_i32, %c0_i32_0 : i32, i32
  }
  func.func @transform_3(%arg0: i32) -> (i32, i32) {
    %c0_i32 = arith.constant 0 : i32
    %c0_i32_0 = arith.constant 0 : i32
    %c0_i32_1 = arith.constant 0 : i32
    return %c0_i32, %c0_i32_0 : i32, i32
  }
  func.func @transform_4(%arg0: i32) -> (i32, i32) {
    %c0_i32 = arith.constant 0 : i32
    %c0_i32_0 = arith.constant 0 : i32
    %c0_i32_1 = arith.constant 0 : i32
    return %c0_i32, %c0_i32_0 : i32, i32
  }
  func.func @transform_5(%arg0: i32) -> (i32, i32) {
    %c0_i32 = arith.constant 0 : i32
    %c0_i32_0 = arith.constant 0 : i32
    %c0_i32_1 = arith.constant 0 : i32
    return %c0_i32, %c0_i32_0 : i32, i32
  }
  func.func @transform_6(%arg0: i32) -> (i32, i32) {
    %c0_i32 = arith.constant 0 : i32
    %c0_i32_0 = arith.constant 0 : i32
    %c0_i32_1 = arith.constant 0 : i32
    return %c0_i32, %c0_i32_0 : i32, i32
  }
  func.func @transform_7(%arg0: i32) -> (i32, i32, i32) {
    %c0_i32 = arith.constant 0 : i32
    %c0_i32_0 = arith.constant 0 : i32
    %c0_i32_1 = arith.constant 0 : i32
    return %arg0, %c0_i32, %c0_i32_0 : i32, i32, i32
  }
}

</mosaic_0001>

<llo_original>
// kernel: tpu_custom_call.1
$region0: #{tpu_custom_call.1}
  #allocation0 [shape = 'u32[]', space=smem, size = 0x4, offset = 0x4, fixed_abs, tag = 'smem constant byte address 0x4 - core index']
  #allocation1 [shape = 'u32[144,128]{1,0:T(1,128)}', space=vmem, size = 0x12000, scoped, tag = 'internal scratch']
  %s0 = inlined_call_operand.hbm [shape: f32[2,8,32], index: 0, kind: input, shape index: {}]
  %s1 = inlined_call_operand.hbm [shape: f32[32,32], index: 1, kind: input, shape index: {}]
  %s2 = inlined_call_operand.hbm [shape: f32[32,32], index: 2, kind: input, shape index: {}]
  %s3 = inlined_call_operand.hbm [shape: f32[32,32], index: 3, kind: input, shape index: {}]
  %s4 = inlined_call_operand.vmem [shape: f32[1,32], index: 4, kind: input, shape index: {}]
  %s5 = inlined_call_operand.vmem [shape: f32[1,32], index: 5, kind: input, shape index: {}]
  %s6 = inlined_call_operand.vmem [shape: f32[1,32], index: 6, kind: input, shape index: {}]
  %s7 = inlined_call_operand.hbm [shape: f32[2,8,32], index: 7, kind: output, shape index: {}]
  %s8 = sld [smem:[#allocation0]]
  $region77: #{tpu_custom_call.1} parent=0
    _
  %s10 = ssub.s32 1, %s8
  %s11 = scalar_select 0, %s10, %s8
  $region1: #{tpu_custom_call.1} parent=0
    #allocation2 [shape = 'u8[8192]{0}', space=vmem, size = 0x2000, scoped, tag = 'input window, operand 0']
    #allocation3 [shape = 's32[2]{0}', space=sflag, size = 0x8, scoped, tag = 'scoped memory for tpu_custom_call.1']
    #allocation4 [shape = 's32[2]{0}', space=sflag, size = 0x8, scoped, tag = 'scoped memory for tpu_custom_call.1']
    #allocation5 [shape = 'u8[16384]{0}', space=vmem, size = 0x4000, scoped, tag = 'input window, operand 1, single buffered']
    #allocation6 [shape = 's32[1]{0}', space=sflag, size = 0x4, scoped, tag = 'scoped memory for tpu_custom_call.1']
    #allocation7 [shape = 'u8[16384]{0}', space=vmem, size = 0x4000, scoped, tag = 'input window, operand 2, single buffered']
    #allocation8 [shape = 'u8[16384]{0}', space=vmem, size = 0x4000, scoped, tag = 'input window, operand 3, single buffered']
    #allocation9 [shape = 's32[1]{0}', space=sflag, size = 0x4, scoped, tag = 'scoped memory for tpu_custom_call.1']
    #allocation10 [shape = 'u8[8192]{0}', space=vmem, size = 0x2000, scoped, tag = 'output window, operand 0']
    %12 = vsyncpa [#allocation3], 0
    %s13 = scalar_lea.sflag [#allocation3], 1
    %14 = vsyncpa %s13, 0
    %15 = vsyncpa [#allocation6], 0
    %16 = vsyncpa [#allocation9], 0
    %17 = vsyncpa [#allocation4], 0
    %s18 = scalar_lea.sflag [#allocation4], 1
    %19 = vsyncpa %s18, 0
    loop: start=0, step=1, limit=4
    $region2: #{tpu_custom_call.1} parent=1 // loop_pre_header
      _
    $region3: #{tpu_custom_call.1} parent=1 // loop_header
      %s21 = sphi 0, %s25
      %p22 = scmp.ge.s32.totalorder %s21, 4
      %s31 = sphi 0, %s33
      %s34 = sphi 0, %s31
      %s35 = sphi 0, %s34
      %s51 = sphi 0, %s35
      %s55 = sphi 0, %s55
      %s57 = sphi 0, %s55
      %s58 = sphi 0, %s57
      %s72 = sphi 0, %s58
      %s76 = sphi 0, %s76
      %s78 = sphi 0, %s76
      %s79 = sphi 0, %s78
      %s93 = sphi 0, %s79
      %s97 = sphi 0, %s97
      %s99 = sphi 0, %s97
      %s100 = sphi 0, %s99
      %s114 = sphi 0, %s100
      %s118 = sphi 0, %s118
      %s120 = sphi 0, %s118
      %s121 = sphi 0, %s120
      %s135 = sphi 0, %s121
      %s139 = sphi 0, %s139
      %s141 = sphi 0, %s139
      %s142 = sphi 0, %s141
      %s156 = sphi 0, %s142
      %s160 = sphi 0, %s160
      %s162 = sphi 0, %s160
      %s163 = sphi 0, %s162
      %s177 = sphi 0, %s163
      %s183 = sphi 0, %s185
      %s186 = sphi 0, %s183
      %s187 = sphi 0, %s186
      %s203 = sphi 0, %s187
    $region4: #{tpu_custom_call.1} parent=1 // loop_header_branch
      %24 = sbr.rel (%p22) target = $region8
    $region5: #{tpu_custom_call.1} parent=1 // loop_body
      %s26 = ssub.s32 %s21, 1
      %s27 = ssub.s32 %s21, 2
      %s28 = sadd.s32 %s21, 1
      %s29 = ssub.s32 %s21, %s28
      %p30 = scmp.eq.s32.totalorder %s29, 0
      %s32 = sadd.s32 %s31, 1
      %s33 = scalar_select %p30, %s31, %s32
      %p36 = pneg %p30
      %p37 = scmp.eq.s32.totalorder %s21, 1
      %p38 = por %p36, %p37
      %p39 = scmp.ne.s32.totalorder %s31, %s34
      %p40 = scmp.eq.s32.totalorder %s21, 0
      %p41 = por %p39, %p40
      %p42 = scmp.ne.s32.totalorder %s31, %s34
      %p43 = scmp.eq.s32.totalorder %s26, 1
      %p44 = por %p42, %p43
      %p45 = scmp.ne.s32.totalorder %s34, %s35
      %p46 = scmp.eq.s32.totalorder %s26, 0
      %p47 = por %p45, %p46
      %p48 = scmp.ne.s32.totalorder %s34, %s35
      %p49 = scmp.eq.s32.totalorder %s27, 1
      %p50 = por %p48, %p49
      %p52 = scmp.ne.s32.totalorder %s35, %s51
      %p53 = scmp.eq.s32.totalorder %s27, 0
      %p54 = por %p52, %p53
      %s56 = sadd.s32 %s55, 1
      %p59 = scmp.eq.s32.totalorder %s21, 1
      %p60 = scmp.ne.s32.totalorder %s55, %s57
      %p61 = scmp.eq.s32.totalorder %s21, 0
      %p62 = por %p60, %p61
      %p63 = scmp.ne.s32.totalorder %s55, %s57
      %p64 = scmp.eq.s32.totalorder %s26, 1
      %p65 = por %p63, %p64
      %p66 = scmp.ne.s32.totalorder %s57, %s58
      %p67 = scmp.eq.s32.totalorder %s26, 0
      %p68 = por %p66, %p67
      %p69 = scmp.ne.s32.totalorder %s57, %s58
      %p70 = scmp.eq.s32.totalorder %s27, 1
      %p71 = por %p69, %p70
      %p73 = scmp.ne.s32.totalorder %s58, %s72
      %p74 = scmp.eq.s32.totalorder %s27, 0
      %p75 = por %p73, %p74
      %s77 = sadd.s32 %s76, 1
      %p80 = scmp.eq.s32.totalorder %s21, 1
      %p81 = scmp.ne.s32.totalorder %s76, %s78
      %p82 = scmp.eq.s32.totalorder %s21, 0
      %p83 = por %p81, %p82
      %p84 = scmp.ne.s32.totalorder %s76, %s78
      %p85 = scmp.eq.s32.totalorder %s26, 1
      %p86 = por %p84, %p85
      %p87 = scmp.ne.s32.totalorder %s78, %s79
      %p88 = scmp.eq.s32.totalorder %s26, 0
      %p89 = por %p87, %p88
      %p90 = scmp.ne.s32.totalorder %s78, %s79
      %p91 = scmp.eq.s32.totalorder %s27, 1
      %p92 = por %p90, %p91
      %p94 = scmp.ne.s32.totalorder %s79, %s93
      %p95 = scmp.eq.s32.totalorder %s27, 0
      %p96 = por %p94, %p95
      %s98 = sadd.s32 %s97, 1
      %p101 = scmp.eq.s32.totalorder %s21, 1
      %p102 = scmp.ne.s32.totalorder %s97, %s99
      %p103 = scmp.eq.s32.totalorder %s21, 0
      %p104 = por %p102, %p103
      %p105 = scmp.ne.s32.totalorder %s97, %s99
      %p106 = scmp.eq.s32.totalorder %s26, 1
      %p107 = por %p105, %p106
      %p108 = scmp.ne.s32.totalorder %s99, %s100
      %p109 = scmp.eq.s32.totalorder %s26, 0
      %p110 = por %p108, %p109
      %p111 = scmp.ne.s32.totalorder %s99, %s100
      %p112 = scmp.eq.s32.totalorder %s27, 1
      %p113 = por %p111, %p112
      %p115 = scmp.ne.s32.totalorder %s100, %s114
      %p116 = scmp.eq.s32.totalorder %s27, 0
      %p117 = por %p115, %p116
      %s119 = sadd.s32 %s118, 1
      %p122 = scmp.eq.s32.totalorder %s21, 1
      %p123 = scmp.ne.s32.totalorder %s118, %s120
      %p124 = scmp.eq.s32.totalorder %s21, 0
      %p125 = por %p123, %p124
      %p126 = scmp.ne.s32.totalorder %s118, %s120
      %p127 = scmp.eq.s32.totalorder %s26, 1
      %p128 = por %p126, %p127
      %p129 = scmp.ne.s32.totalorder %s120, %s121
      %p130 = scmp.eq.s32.totalorder %s26, 0
      %p131 = por %p129, %p130
      %p132 = scmp.ne.s32.totalorder %s120, %s121
      %p133 = scmp.eq.s32.totalorder %s27, 1
      %p134 = por %p132, %p133
      %p136 = scmp.ne.s32.totalorder %s121, %s135
      %p137 = scmp.eq.s32.totalorder %s27, 0
      %p138 = por %p136, %p137
      %s140 = sadd.s32 %s139, 1
      %p143 = scmp.eq.s32.totalorder %s21, 1
      %p144 = scmp.ne.s32.totalorder %s139, %s141
      %p145 = scmp.eq.s32.totalorder %s21, 0
      %p146 = por %p144, %p145
      %p147 = scmp.ne.s32.totalorder %s139, %s141
      %p148 = scmp.eq.s32.totalorder %s26, 1
      %p149 = por %p147, %p148
      %p150 = scmp.ne.s32.totalorder %s141, %s142
      %p151 = scmp.eq.s32.totalorder %s26, 0
      %p152 = por %p150, %p151
      %p153 = scmp.ne.s32.totalorder %s141, %s142
      %p154 = scmp.eq.s32.totalorder %s27, 1
      %p155 = por %p153, %p154
      %p157 = scmp.ne.s32.totalorder %s142, %s156
      %p158 = scmp.eq.s32.totalorder %s27, 0
      %p159 = por %p157, %p158
      %s161 = sadd.s32 %s160, 1
      %p164 = scmp.eq.s32.totalorder %s21, 1
      %p165 = scmp.ne.s32.totalorder %s160, %s162
      %p166 = scmp.eq.s32.totalorder %s21, 0
      %p167 = por %p165, %p166
      %p168 = scmp.ne.s32.totalorder %s160, %s162
      %p169 = scmp.eq.s32.totalorder %s26, 1
      %p170 = por %p168, %p169
      %p171 = scmp.ne.s32.totalorder %s162, %s163
      %p172 = scmp.eq.s32.totalorder %s26, 0
      %p173 = por %p171, %p172
      %p174 = scmp.ne.s32.totalorder %s162, %s163
      %p175 = scmp.eq.s32.totalorder %s27, 1
      %p176 = por %p174, %p175
      %p178 = scmp.ne.s32.totalorder %s163, %s177
      %p179 = scmp.eq.s32.totalorder %s27, 0
      %p180 = por %p178, %p179
      %s181 = ssub.s32 %s21, %s28
      %p182 = scmp.eq.s32.totalorder %s181, 0
      %s184 = sadd.s32 %s183, 1
      %s185 = scalar_select %p182, %s183, %s184
      %p188 = pneg %p182
      %p189 = scmp.eq.s32.totalorder %s21, 1
      %p190 = por %p188, %p189
      %p191 = scmp.ne.s32.totalorder %s183, %s186
      %p192 = scmp.eq.s32.totalorder %s21, 0
      %p193 = por %p191, %p192
      %p194 = scmp.ne.s32.totalorder %s183, %s186
      %p195 = scmp.eq.s32.totalorder %s26, 1
      %p196 = por %p194, %p195
      %p197 = scmp.ne.s32.totalorder %s186, %s187
      %p198 = scmp.eq.s32.totalorder %s26, 0
      %p199 = por %p197, %p198
      %p200 = scmp.ne.s32.totalorder %s186, %s187
      %p201 = scmp.eq.s32.totalorder %s27, 1
      %p202 = por %p200, %p201
      %p204 = scmp.ne.s32.totalorder %s187, %s203
      %p205 = scmp.eq.s32.totalorder %s27, 0
      %p206 = por %p204, %p205
      %p207 = scmp.le.s32.totalorder 1, %s21
      %p208 = scmp.lt.s32.totalorder %s21, 3
      %p209 = pnand %p207, %p208
      %p210 = pneg %p209
      // Predicated region
      $region9: #{tpu_custom_call.1} parent=5 // pred_check
        _
      $region10: #{tpu_custom_call.1} parent=5 // pred_check_branch
        %212 = sbr.rel (%p209) target = $region12
      $region11: #{tpu_custom_call.1} parent=5 // pred_region
        %s213 = ssub.s32 %s21, 1
        // Predicated region
        $region13: #{tpu_custom_call.1} parent=11 // pred_check
          %p214 = pneg %p68
        $region14: #{tpu_custom_call.1} parent=11 // pred_check_branch
          %216 = sbr.rel (%p214) target = $region16
        $region15: #{tpu_custom_call.1} parent=11 // pred_region
          %s218 = ssub.s32 512, 512
          %219 = vsyncadd [#allocation6], %s218
          %s220 = sshll.u32 [#allocation5], 4
          %s221 = int_to_ptr.vmem [resolvable:$true] %s220
          %226 = dma.hbm_to_vmem [thread:$0]  %s1, 512, %s221, [#allocation6], 128, 128, 8
        $region16: #{tpu_custom_call.1} parent=11 // pred_fallthru
          _
        // Predicated region
        $region17: #{tpu_custom_call.1} parent=11 // pred_check
          %p227 = pneg %p89
        $region18: #{tpu_custom_call.1} parent=11 // pred_check_branch
          %229 = sbr.rel (%p227) target = $region20
        $region19: #{tpu_custom_call.1} parent=11 // pred_region
          %s231 = ssub.s32 512, 512
          %232 = vsyncadd [#allocation6], %s231
          %s233 = sshll.u32 [#allocation7], 4
          %s234 = int_to_ptr.vmem [resolvable:$true] %s233
          %239 = dma.hbm_to_vmem [thread:$0]  %s2, 512, %s234, [#allocation6], 128, 128, 8
        $region20: #{tpu_custom_call.1} parent=11 // pred_fallthru
          _
        // Predicated region
        $region21: #{tpu_custom_call.1} parent=11 // pred_check
          %p240 = pneg %p110
        $region22: #{tpu_custom_call.1} parent=11 // pred_check_branch
          %242 = sbr.rel (%p240) target = $region24
        $region23: #{tpu_custom_call.1} parent=11 // pred_region
          %s244 = ssub.s32 512, 512
          %245 = vsyncadd [#allocation9], %s244
          %s246 = sshll.u32 [#allocation8], 4
          %s247 = int_to_ptr.vmem [resolvable:$true] %s246
          %252 = dma.hbm_to_vmem [thread:$0]  %s3, 512, %s247, [#allocation9], 128, 128, 8
        $region24: #{tpu_custom_call.1} parent=11 // pred_fallthru
          _
        // Predicated region
        $region25: #{tpu_custom_call.1} parent=11 // pred_check
          %p253 = pneg %p131
        $region26: #{tpu_custom_call.1} parent=11 // pred_check_branch
          %255 = sbr.rel (%p253) target = $region28
        $region27: #{tpu_custom_call.1} parent=11 // pred_region
          _
        $region28: #{tpu_custom_call.1} parent=11 // pred_fallthru
          _
        // Predicated region
        $region29: #{tpu_custom_call.1} parent=11 // pred_check
          %p256 = pneg %p152
        $region30: #{tpu_custom_call.1} parent=11 // pred_check_branch
          %258 = sbr.rel (%p256) target = $region32
        $region31: #{tpu_custom_call.1} parent=11 // pred_region
          _
        $region32: #{tpu_custom_call.1} parent=11 // pred_fallthru
          _
        // Predicated region
        $region33: #{tpu_custom_call.1} parent=11 // pred_check
          %p259 = pneg %p173
        $region34: #{tpu_custom_call.1} parent=11 // pred_check_branch
          %261 = sbr.rel (%p259) target = $region36
        $region35: #{tpu_custom_call.1} parent=11 // pred_region
          _
        $region36: #{tpu_custom_call.1} parent=11 // pred_fallthru
          _
      $region12: #{tpu_custom_call.1} parent=5 // pred_fallthru
        _
      %p262 = scmp.lt.s32.totalorder %s21, 2
      // Predicated region
      $region37: #{tpu_custom_call.1} parent=5 // pred_check
        %p263 = pneg %p262
      $region38: #{tpu_custom_call.1} parent=5 // pred_check_branch
        %265 = sbr.rel (%p263) target = $region40
      $region39: #{tpu_custom_call.1} parent=5 // pred_region
        // Predicated region
        $region41: #{tpu_custom_call.1} parent=39 // pred_check
          %p266 = pneg %p41
        $region42: #{tpu_custom_call.1} parent=39 // pred_check_branch
          %268 = sbr.rel (%p266) target = $region44
        $region43: #{tpu_custom_call.1} parent=39 // pred_region
          %s269 = sand.u32 %s31, 1
          %s270 = scalar_lea.sflag [#allocation3], %s269
          %s271 = sand.u32 %s31, 1
          %s272 = smul.addr %s271, 8
          %s273 = scalar_lea.vmem [#allocation2], %s272
          %s275 = ssub.s32 128, 128
          %276 = vsyncadd %s270, %s275
          %s277 = smul.addr %s21, 128
          %s278 = scalar_lea.hbm %s0, %s277
          %s280 = sshll.u32 %s273, 4
          %s281 = int_to_ptr.vmem [resolvable:$true] %s280
          %283 = dma.hbm_to_vmem [thread:$0]  %s278, 128, %s281, %s270
        $region44: #{tpu_custom_call.1} parent=39 // pred_fallthru
          _
      $region40: #{tpu_custom_call.1} parent=5 // pred_fallthru
        _
      %p284 = scmp.le.s32.totalorder 1, %s21
      %p285 = scmp.lt.s32.totalorder %s21, 3
      %p286 = pnand %p284, %p285
      %p287 = pneg %p286
      // Predicated region
      $region45: #{tpu_custom_call.1} parent=5 // pred_check
        _
      $region46: #{tpu_custom_call.1} parent=5 // pred_check_branch
        %289 = sbr.rel (%p286) target = $region48
      $region47: #{tpu_custom_call.1} parent=5 // pred_region
        %s290 = ssub.s32 %s21, 1
        %s291 = sand.u32 %s34, 1
        %s292 = scalar_lea.sflag [#allocation3], %s291
        %s293 = sand.u32 %s34, 1
        %s294 = smul.addr %s293, 8
        %s295 = scalar_lea.vmem [#allocation2], %s294
        // Predicated region
        $region49: #{tpu_custom_call.1} parent=47 // pred_check
          %p296 = pneg %p47
        $region50: #{tpu_custom_call.1} parent=47 // pred_check_branch
          %298 = sbr.rel (%p296) target = $region52
        $region51: #{tpu_custom_call.1} parent=47 // pred_region
          %299 = dma.done %s292, 128
        $region52: #{tpu_custom_call.1} parent=47 // pred_fallthru
          _
        // Predicated region
        $region53: #{tpu_custom_call.1} parent=47 // pred_check
          %p300 = pneg %p68
        $region54: #{tpu_custom_call.1} parent=47 // pred_check_branch
          %302 = sbr.rel (%p300) target = $region56
        $region55: #{tpu_custom_call.1} parent=47 // pred_region
          %303 = dma.done [#allocation6], 512
        $region56: #{tpu_custom_call.1} parent=47 // pred_fallthru
          _
        // Predicated region
        $region57: #{tpu_custom_call.1} parent=47 // pred_check
          %p304 = pneg %p89
        $region58: #{tpu_custom_call.1} parent=47 // pred_check_branch
          %306 = sbr.rel (%p304) target = $region60
        $region59: #{tpu_custom_call.1} parent=47 // pred_region
          %307 = dma.done [#allocation6], 512
        $region60: #{tpu_custom_call.1} parent=47 // pred_fallthru
          _
        // Predicated region
        $region61: #{tpu_custom_call.1} parent=47 // pred_check
          %p308 = pneg %p110
        $region62: #{tpu_custom_call.1} parent=47 // pred_check_branch
          %310 = sbr.rel (%p308) target = $region64
        $region63: #{tpu_custom_call.1} parent=47 // pred_region
          %311 = dma.done [#allocation9], 512
        $region64: #{tpu_custom_call.1} parent=47 // pred_fallthru
          _
        %s312 = sand.u32 %s34, 1
        %s313 = scalar_lea.sflag [#allocation3], %s312
        %s314 = sand.u32 %s34, 1
        %s315 = smul.addr %s314, 8
        %s316 = scalar_lea.vmem [#allocation2], %s315
        %p317 = pneg %p47
        %p318 = pneg %p44
        %p319 = pneg %p68
        %p320 = pneg %p65
        %p321 = pneg %p89
        %p322 = pneg %p86
        %p323 = pneg %p110
        %p324 = pneg %p107
        %p325 = pneg %p131
        %p326 = pneg %p128
        %p327 = pneg %p152
        %p328 = pneg %p149
        %p329 = pneg %p173
        %p330 = pneg %p170
        %p331 = pneg %p199
        %p332 = pneg %p196
        %s333 = sand.u32 %s186, 1
        %s334 = scalar_lea.sflag [#allocation4], %s333
        %s335 = sand.u32 %s186, 1
        %s336 = smul.addr %s335, 8
        %s337 = scalar_lea.vmem [#allocation10], %s336
        %v338 = vld [vmem:[%s295] sm:$0xff]
        %v339 = vld [vmem:[#allocation5] sm:$0xff]
        %v340 = vld [vmem:[#allocation5 + $0x8] sm:$0xff]
        %v341 = vld [vmem:[#allocation5 + $0x10] sm:$0xff]
        %v342 = vld [vmem:[#allocation5 + $0x18] sm:$0xff]
        %v343 = vld [vmem:[#allocation7] sm:$0xff]
        %v344 = vld [vmem:[#allocation7 + $0x8] sm:$0xff]
        %v345 = vld [vmem:[#allocation7 + $0x10] sm:$0xff]
        %v346 = vld [vmem:[#allocation7 + $0x18] sm:$0xff]
        %v347 = vld [vmem:[#allocation8] sm:$0xff]
        %v348 = vld [vmem:[#allocation8 + $0x8] sm:$0xff]
        %v349 = vld [vmem:[#allocation8 + $0x10] sm:$0xff]
        %v350 = vld [vmem:[#allocation8 + $0x18] sm:$0xff]
        %v351 = vld [vmem:[%s4] sm:$0x1]
        %v352 = vld [vmem:[%s5] sm:$0x1]
        %v353 = vld [vmem:[%s6] sm:$0x1]
        %v355 = vlaneseq
        %v356 = vshrl.u32 %v355, 7
        %v357 = vsub.s32 0, %v356
        %v358 = vrot.slane %v351, %v357
        %vm360 = vcmask 261120
        %v362 = vsel %vm360, %v338, 0
        %364 = vmatprep.subr.mxu0 0.0
        %365 = vmatpush1.msra.mxu0 0.0
        %366 = vmatprep.subr.mxu0 0.0
        %367 = vmatpush1.msra.mxu0 0.0
        %368 = vmatprep.subr.mxu0 0.0
        %369 = vmatpush1.msra.mxu0 0.0
        %370 = vmatprep.subr.mxu0 0.0
        %371 = vmatpush1.msra.mxu0 0.0
        %372 = vmatprep.subr.mxu0 0.0
        %373 = vmatpush1.msra.mxu0 0.0
        %374 = vmatprep.subr.mxu0 0.0
        %375 = vmatpush1.msra.mxu0 0.0
        %376 = vmatprep.subr.mxu0 0.0
        %377 = vmatpush1.msra.mxu0 0.0
        %378 = vmatprep.subr.mxu0 0.0
        %379 = vmatpush1.msra.mxu0 0.0
        %380 = vmatprep.subr.mxu0 0.0
        %381 = vmatpush1.msra.mxu0 0.0
        %382 = vmatprep.subr.mxu0 0.0
        %383 = vmatpush1.msra.mxu0 0.0
        %384 = vmatprep.subr.mxu0 0.0
        %385 = vmatpush1.msra.mxu0 0.0
        %386 = vmatprep.subr.mxu0 0.0
        %387 = vmatpush1.msra.mxu0 0.0
        %388 = vmatprep.subr.mxu0 0.0
        %389 = vmatpush1.msra.mxu0 %v342
        %390 = vmatprep.subr.mxu0 0.0
        %391 = vmatpush1.msra.mxu0 %v341
        %392 = vmatprep.subr.mxu0 0.0
        %393 = vmatpush1.msra.mxu0 %v340
        %394 = vmatprep.subr.mxu0 0.0
        %395 = vmatpush1.msra.mxu0 %v339
        %396 = vmatprep.subr.mxu0 0.0
        %397 = vmatpush2.msra.mxu0 0.0
        %398 = vmatprep.subr.mxu0 0.0
        %399 = vmatpush2.msra.mxu0 0.0
        %400 = vmatprep.subr.mxu0 0.0
        %401 = vmatpush2.msra.mxu0 0.0
        %402 = vmatprep.subr.mxu0 0.0
        %403 = vmatpush2.msra.mxu0 0.0
        %404 = vmatprep.subr.mxu0 0.0
        %405 = vmatpush2.msra.mxu0 0.0
        %406 = vmatprep.subr.mxu0 0.0
        %407 = vmatpush2.msra.mxu0 0.0
        %408 = vmatprep.subr.mxu0 0.0
        %409 = vmatpush2.msra.mxu0 0.0
        %410 = vmatprep.subr.mxu0 0.0
        %411 = vmatpush2.msra.mxu0 0.0
        %412 = vmatprep.subr.mxu0 0.0
        %413 = vmatpush2.msra.mxu0 0.0
        %414 = vmatprep.subr.mxu0 0.0
        %415 = vmatpush2.msra.mxu0 0.0
        %416 = vmatprep.subr.mxu0 0.0
        %417 = vmatpush2.msra.mxu0 0.0
        %418 = vmatprep.subr.mxu0 0.0
        %419 = vmatpush2.msra.mxu0 0.0
        %420 = vmatprep.subr.mxu0 0.0
        %421 = vmatpush2.msra.mxu0 0.0
        %422 = vmatprep.subr.mxu0 0.0
        %423 = vmatpush2.msra.mxu0 0.0
        %424 = vmatprep.subr.mxu0 0.0
        %425 = vmatpush2.msra.mxu0 0.0
        %426 = vmatprep.subr.mxu0 0.0
        %427 = vmatpush2.msra.mxu0 0.0
        %428 = vmatprep.mubr.f32.mxu0 0.0
        %429 = vmatmul.mubr.f32.gmra.mxu0 %v362
        %v430 = vpop.f32.mrf.mxu0
        %v431 = vadd.f32 %v358, %v430
        %v432 = vpop.f32.mrf.mxu0
        %433 = vdwg.mxu0
        %v435 = vlaneseq
        %v436 = vshrl.u32 %v435, 7
        %v437 = vsub.s32 0, %v436
        %v438 = vrot.slane %v352, %v437
        %440 = vmatprep.subr.mxu0 0.0
        %441 = vmatpush1.msra.mxu0 0.0
        %442 = vmatprep.subr.mxu0 0.0
        %443 = vmatpush1.msra.mxu0 0.0
        %444 = vmatprep.subr.mxu0 0.0
        %445 = vmatpush1.msra.mxu0 0.0
        %446 = vmatprep.subr.mxu0 0.0
        %447 = vmatpush1.msra.mxu0 0.0
        %448 = vmatprep.subr.mxu0 0.0
        %449 = vmatpush1.msra.mxu0 0.0
        %450 = vmatprep.subr.mxu0 0.0
        %451 = vmatpush1.msra.mxu0 0.0
        %452 = vmatprep.subr.mxu0 0.0
        %453 = vmatpush1.msra.mxu0 0.0
        %454 = vmatprep.subr.mxu0 0.0
        %455 = vmatpush1.msra.mxu0 0.0
        %456 = vmatprep.subr.mxu0 0.0
        %457 = vmatpush1.msra.mxu0 0.0
        %458 = vmatprep.subr.mxu0 0.0
        %459 = vmatpush1.msra.mxu0 0.0
        %460 = vmatprep.subr.mxu0 0.0
        %461 = vmatpush1.msra.mxu0 0.0
        %462 = vmatprep.subr.mxu0 0.0
        %463 = vmatpush1.msra.mxu0 0.0
        %464 = vmatprep.subr.mxu0 0.0
        %465 = vmatpush1.msra.mxu0 %v346
        %466 = vmatprep.subr.mxu0 0.0
        %467 = vmatpush1.msra.mxu0 %v345
        %468 = vmatprep.subr.mxu0 0.0
        %469 = vmatpush1.msra.mxu0 %v344
        %470 = vmatprep.subr.mxu0 0.0
        %471 = vmatpush1.msra.mxu0 %v343
        %472 = vmatprep.subr.mxu0 0.0
        %473 = vmatpush2.msra.mxu0 0.0
        %474 = vmatprep.subr.mxu0 0.0
        %475 = vmatpush2.msra.mxu0 0.0
        %476 = vmatprep.subr.mxu0 0.0
        %477 = vmatpush2.msra.mxu0 0.0
        %478 = vmatprep.subr.mxu0 0.0
        %479 = vmatpush2.msra.mxu0 0.0
        %480 = vmatprep.subr.mxu0 0.0
        %481 = vmatpush2.msra.mxu0 0.0
        %482 = vmatprep.subr.mxu0 0.0
        %483 = vmatpush2.msra.mxu0 0.0
        %484 = vmatprep.subr.mxu0 0.0
        %485 = vmatpush2.msra.mxu0 0.0
        %486 = vmatprep.subr.mxu0 0.0
        %487 = vmatpush2.msra.mxu0 0.0
        %488 = vmatprep.subr.mxu0 0.0
        %489 = vmatpush2.msra.mxu0 0.0
        %490 = vmatprep.subr.mxu0 0.0
        %491 = vmatpush2.msra.mxu0 0.0
        %492 = vmatprep.subr.mxu0 0.0
        %493 = vmatpush2.msra.mxu0 0.0
        %494 = vmatprep.subr.mxu0 0.0
        %495 = vmatpush2.msra.mxu0 0.0
        %496 = vmatprep.subr.mxu0 0.0
        %497 = vmatpush2.msra.mxu0 0.0
        %498 = vmatprep.subr.mxu0 0.0
        %499 = vmatpush2.msra.mxu0 0.0
        %500 = vmatprep.subr.mxu0 0.0
        %501 = vmatpush2.msra.mxu0 0.0
        %502 = vmatprep.subr.mxu0 0.0
        %503 = vmatpush2.msra.mxu0 0.0
        %504 = vmatprep.mubr.f32.mxu0 0.0
        %505 = vmatmul.mubr.f32.gmra.mxu0 %v362
        %v506 = vpop.f32.mrf.mxu0
        %v507 = vadd.f32 %v438, %v506
        %v508 = vpop.f32.mrf.mxu0
        %509 = vdwg.mxu0
        %v511 = vlaneseq
        %v512 = vshrl.u32 %v511, 7
        %v513 = vsub.s32 0, %v512
        %v514 = vrot.slane %v353, %v513
        %516 = vmatprep.subr.mxu0 0.0
        %517 = vmatpush1.msra.mxu0 0.0
        %518 = vmatprep.subr.mxu0 0.0
        %519 = vmatpush1.msra.mxu0 0.0
        %520 = vmatprep.subr.mxu0 0.0
        %521 = vmatpush1.msra.mxu0 0.0
        %522 = vmatprep.subr.mxu0 0.0
        %523 = vmatpush1.msra.mxu0 0.0
        %524 = vmatprep.subr.mxu0 0.0
        %525 = vmatpush1.msra.mxu0 0.0
        %526 = vmatprep.subr.mxu0 0.0
        %527 = vmatpush1.msra.mxu0 0.0
        %528 = vmatprep.subr.mxu0 0.0
        %529 = vmatpush1.msra.mxu0 0.0
        %530 = vmatprep.subr.mxu0 0.0
        %531 = vmatpush1.msra.mxu0 0.0
        %532 = vmatprep.subr.mxu0 0.0
        %533 = vmatpush1.msra.mxu0 0.0
        %534 = vmatprep.subr.mxu0 0.0
        %535 = vmatpush1.msra.mxu0 0.0
        %536 = vmatprep.subr.mxu0 0.0
        %537 = vmatpush1.msra.mxu0 0.0
        %538 = vmatprep.subr.mxu0 0.0
        %539 = vmatpush1.msra.mxu0 0.0
        %540 = vmatprep.subr.mxu0 0.0
        %541 = vmatpush1.msra.mxu0 %v350
        %542 = vmatprep.subr.mxu0 0.0
        %543 = vmatpush1.msra.mxu0 %v349
        %544 = vmatprep.subr.mxu0 0.0
        %545 = vmatpush1.msra.mxu0 %v348
        %546 = vmatprep.subr.mxu0 0.0
        %547 = vmatpush1.msra.mxu0 %v347
        %548 = vmatprep.subr.mxu0 0.0
        %549 = vmatpush2.msra.mxu0 0.0
        %550 = vmatprep.subr.mxu0 0.0
        %551 = vmatpush2.msra.mxu0 0.0
        %552 = vmatprep.subr.mxu0 0.0
        %553 = vmatpush2.msra.mxu0 0.0
        %554 = vmatprep.subr.mxu0 0.0
        %555 = vmatpush2.msra.mxu0 0.0
        %556 = vmatprep.subr.mxu0 0.0
        %557 = vmatpush2.msra.mxu0 0.0
        %558 = vmatprep.subr.mxu0 0.0
        %559 = vmatpush2.msra.mxu0 0.0
        %560 = vmatprep.subr.mxu0 0.0
        %561 = vmatpush2.msra.mxu0 0.0
        %562 = vmatprep.subr.mxu0 0.0
        %563 = vmatpush2.msra.mxu0 0.0
        %564 = vmatprep.subr.mxu0 0.0
        %565 = vmatpush2.msra.mxu0 0.0
        %566 = vmatprep.subr.mxu0 0.0
        %567 = vmatpush2.msra.mxu0 0.0
        %568 = vmatprep.subr.mxu0 0.0
        %569 = vmatpush2.msra.mxu0 0.0
        %570 = vmatprep.subr.mxu0 0.0
        %571 = vmatpush2.msra.mxu0 0.0
        %572 = vmatprep.subr.mxu0 0.0
        %573 = vmatpush2.msra.mxu0 0.0
        %574 = vmatprep.subr.mxu0 0.0
        %575 = vmatpush2.msra.mxu0 0.0
        %576 = vmatprep.subr.mxu0 0.0
        %577 = vmatpush2.msra.mxu0 0.0
        %578 = vmatprep.subr.mxu0 0.0
        %579 = vmatpush2.msra.mxu0 0.0
        %580 = vmatprep.mubr.f32.mxu0 0.0
        %581 = vmatmul.mubr.f32.gmra.mxu0 %v362
        %v582 = vpop.f32.mrf.mxu0
        %v583 = vadd.f32 %v514, %v582
        %v584 = vpop.f32.mrf.mxu0
        %585 = vdwg.mxu0
        %vm586 = vcmask 64512
        %v588 = vsel %vm586, %v431, 0
        %v591 = vsel %vm586, %v507, 0
        %593 = vmatprep.subr.mxu0 0.0
        %594 = vmatpush1.xpose.msra.mxu0 0.0
        %595 = vmatprep.subr.mxu0 0.0
        %596 = vmatpush1.xpose.msra.mxu0 0.0
        %597 = vmatprep.subr.mxu0 0.0
        %598 = vmatpush1.xpose.msra.mxu0 0.0
        %599 = vmatprep.subr.mxu0 0.0
        %600 = vmatpush1.xpose.msra.mxu0 0.0
        %601 = vmatprep.subr.mxu0 0.0
        %602 = vmatpush1.xpose.msra.mxu0 0.0
        %603 = vmatprep.subr.mxu0 0.0
        %604 = vmatpush1.xpose.msra.mxu0 0.0
        %605 = vmatprep.subr.mxu0 0.0
        %606 = vmatpush1.xpose.msra.mxu0 0.0
        %607 = vmatprep.subr.mxu0 0.0
        %608 = vmatpush1.xpose.msra.mxu0 0.0
        %609 = vmatprep.subr.mxu0 0.0
        %610 = vmatpush1.xpose.msra.mxu0 0.0
        %611 = vmatprep.subr.mxu0 0.0
        %612 = vmatpush1.xpose.msra.mxu0 0.0
        %613 = vmatprep.subr.mxu0 0.0
        %614 = vmatpush1.xpose.msra.mxu0 0.0
        %615 = vmatprep.subr.mxu0 0.0
        %616 = vmatpush1.xpose.msra.mxu0 0.0
        %617 = vmatprep.subr.mxu0 0.0
        %618 = vmatpush1.xpose.msra.mxu0 0.0
        %619 = vmatprep.subr.mxu0 0.0
        %620 = vmatpush1.xpose.msra.mxu0 0.0
        %621 = vmatprep.subr.mxu0 0.0
        %622 = vmatpush1.xpose.msra.mxu0 0.0
        %623 = vmatprep.subr.mxu0 0.0
        %624 = vmatpush1.xpose.msra.mxu0 %v591
        %625 = vmatprep.subr.mxu0 0.0
        %626 = vmatpush2.xpose.msra.mxu0 0.0
        %627 = vmatprep.subr.mxu0 0.0
        %628 = vmatpush2.xpose.msra.mxu0 0.0
        %629 = vmatprep.subr.mxu0 0.0
        %630 = vmatpush2.xpose.msra.mxu0 0.0
        %631 = vmatprep.subr.mxu0 0.0
        %632 = vmatpush2.xpose.msra.mxu0 0.0
        %633 = vmatprep.subr.mxu0 0.0
        %634 = vmatpush2.xpose.msra.mxu0 0.0
        %635 = vmatprep.subr.mxu0 0.0
        %636 = vmatpush2.xpose.msra.mxu0 0.0
        %637 = vmatprep.subr.mxu0 0.0
        %638 = vmatpush2.xpose.msra.mxu0 0.0
        %639 = vmatprep.subr.mxu0 0.0
        %640 = vmatpush2.xpose.msra.mxu0 0.0
        %641 = vmatprep.subr.mxu0 0.0
        %642 = vmatpush2.xpose.msra.mxu0 0.0
        %643 = vmatprep.subr.mxu0 0.0
        %644 = vmatpush2.xpose.msra.mxu0 0.0
        %645 = vmatprep.subr.mxu0 0.0
        %646 = vmatpush2.xpose.msra.mxu0 0.0
        %647 = vmatprep.subr.mxu0 0.0
        %648 = vmatpush2.xpose.msra.mxu0 0.0
        %649 = vmatprep.subr.mxu0 0.0
        %650 = vmatpush2.xpose.msra.mxu0 0.0
        %651 = vmatprep.subr.mxu0 0.0
        %652 = vmatpush2.xpose.msra.mxu0 0.0
        %653 = vmatprep.subr.mxu0 0.0
        %654 = vmatpush2.xpose.msra.mxu0 0.0
        %655 = vmatprep.subr.mxu0 0.0
        %656 = vmatpush2.xpose.msra.mxu0 0.0
        %657 = vmatprep.mubr.f32.mxu0 0.0
        %658 = vmatmul.mubr.f32.gmra.mxu0 %v588
        %v659 = vpop.f32.mrf.mxu0
        %v660 = vadd.f32 0.0, %v659
        %v661 = vpop.f32.mrf.mxu0
        %662 = vdwg.mxu0
        %v663 = vmul.f32 %v660, 0.35355338
        %v664 = vsel %vm586, %v663, -inf
        %665 = vmax.xlane.f32.xlu0 %v664
        %v666 = vpop.xlane.xlu0 %665
        %v667 = vsub.f32 %v663, %v666
        %v668 = vmul.f32 %v667, 1.442695
        %v669 = vpow.pop %v668
        %v670 = vsel %vm586, %v669, 0.0
        %671 = vadd.xlane.f32.xlu0 %v670
        %v672 = vpop.xlane.xlu0 %671
        %v673 = vrcp.pop %v672
        %v674 = vmul.f32 %v669, %v673
        %v676 = vsel %vm586, %v674, 0
        %678 = vmatprep.subr.mxu0 0.0
        %679 = vmatpush1.msra.mxu0 0.0
        %680 = vmatprep.subr.mxu0 0.0
        %681 = vmatpush1.msra.mxu0 0.0
        %682 = vmatprep.subr.mxu0 0.0
        %683 = vmatpush1.msra.mxu0 0.0
        %684 = vmatprep.subr.mxu0 0.0
        %685 = vmatpush1.msra.mxu0 0.0
        %686 = vmatprep.subr.mxu0 0.0
        %687 = vmatpush1.msra.mxu0 0.0
        %688 = vmatprep.subr.mxu0 0.0
        %689 = vmatpush1.msra.mxu0 0.0
        %690 = vmatprep.subr.mxu0 0.0
        %691 = vmatpush1.msra.mxu0 0.0
        %692 = vmatprep.subr.mxu0 0.0
        %693 = vmatpush1.msra.mxu0 0.0
        %694 = vmatprep.subr.mxu0 0.0
        %695 = vmatpush1.msra.mxu0 0.0
        %696 = vmatprep.subr.mxu0 0.0
        %697 = vmatpush1.msra.mxu0 0.0
        %698 = vmatprep.subr.mxu0 0.0
        %699 = vmatpush1.msra.mxu0 0.0
        %700 = vmatprep.subr.mxu0 0.0
        %701 = vmatpush1.msra.mxu0 0.0
        %702 = vmatprep.subr.mxu0 0.0
        %703 = vmatpush1.msra.mxu0 0.0
        %704 = vmatprep.subr.mxu0 0.0
        %705 = vmatpush1.msra.mxu0 0.0
        %706 = vmatprep.subr.mxu0 0.0
        %707 = vmatpush1.msra.mxu0 0.0
        %708 = vmatprep.subr.mxu0 0.0
        %709 = vmatpush1.msra.mxu0 %v583
        %710 = vmatprep.subr.mxu0 0.0
        %711 = vmatpush2.msra.mxu0 0.0
        %712 = vmatprep.subr.mxu0 0.0
        %713 = vmatpush2.msra.mxu0 0.0
        %714 = vmatprep.subr.mxu0 0.0
        %715 = vmatpush2.msra.mxu0 0.0
        %716 = vmatprep.subr.mxu0 0.0
        %717 = vmatpush2.msra.mxu0 0.0
        %718 = vmatprep.subr.mxu0 0.0
        %719 = vmatpush2.msra.mxu0 0.0
        %720 = vmatprep.subr.mxu0 0.0
        %721 = vmatpush2.msra.mxu0 0.0
        %722 = vmatprep.subr.mxu0 0.0
        %723 = vmatpush2.msra.mxu0 0.0
        %724 = vmatprep.subr.mxu0 0.0
        %725 = vmatpush2.msra.mxu0 0.0
        %726 = vmatprep.subr.mxu0 0.0
        %727 = vmatpush2.msra.mxu0 0.0
        %728 = vmatprep.subr.mxu0 0.0
        %729 = vmatpush2.msra.mxu0 0.0
        %730 = vmatprep.subr.mxu0 0.0
        %731 = vmatpush2.msra.mxu0 0.0
        %732 = vmatprep.subr.mxu0 0.0
        %733 = vmatpush2.msra.mxu0 0.0
        %734 = vmatprep.subr.mxu0 0.0
        %735 = vmatpush2.msra.mxu0 0.0
        %736 = vmatprep.subr.mxu0 0.0
        %737 = vmatpush2.msra.mxu0 0.0
        %738 = vmatprep.subr.mxu0 0.0
        %739 = vmatpush2.msra.mxu0 0.0
        %740 = vmatprep.subr.mxu0 0.0
        %741 = vmatpush2.msra.mxu0 0.0
        %742 = vmatprep.mubr.f32.mxu0 0.0
        %743 = vmatmul.mubr.f32.gmra.mxu0 %v676
        %v744 = vpop.f32.mrf.mxu0
        %v745 = vadd.f32 0.0, %v744
        %v746 = vpop.f32.mrf.mxu0
        %747 = vdwg.mxu0
        %748 = vrot.lane.b32.xlu0 %v431, 120
        %v749 = vpop.permute.xlu0 %748
        %750 = vrot.lane.b32.xlu0 %v507, 120
        %v751 = vpop.permute.xlu0 %750
        %v752 = vsel %vm586, %v749, 0
        %v754 = vsel %vm586, %v751, 0
        %756 = vmatprep.subr.mxu0 0.0
        %757 = vmatpush1.xpose.msra.mxu0 0.0
        %758 = vmatprep.subr.mxu0 0.0
        %759 = vmatpush1.xpose.msra.mxu0 0.0
        %760 = vmatprep.subr.mxu0 0.0
        %761 = vmatpush1.xpose.msra.mxu0 0.0
        %762 = vmatprep.subr.mxu0 0.0
        %763 = vmatpush1.xpose.msra.mxu0 0.0
        %764 = vmatprep.subr.mxu0 0.0
        %765 = vmatpush1.xpose.msra.mxu0 0.0
        %766 = vmatprep.subr.mxu0 0.0
        %767 = vmatpush1.xpose.msra.mxu0 0.0
        %768 = vmatprep.subr.mxu0 0.0
        %769 = vmatpush1.xpose.msra.mxu0 0.0
        %770 = vmatprep.subr.mxu0 0.0
        %771 = vmatpush1.xpose.msra.mxu0 0.0
        %772 = vmatprep.subr.mxu0 0.0
        %773 = vmatpush1.xpose.msra.mxu0 0.0
        %774 = vmatprep.subr.mxu0 0.0
        %775 = vmatpush1.xpose.msra.mxu0 0.0
        %776 = vmatprep.subr.mxu0 0.0
        %777 = vmatpush1.xpose.msra.mxu0 0.0
        %778 = vmatprep.subr.mxu0 0.0
        %779 = vmatpush1.xpose.msra.mxu0 0.0
        %780 = vmatprep.subr.mxu0 0.0
        %781 = vmatpush1.xpose.msra.mxu0 0.0
        %782 = vmatprep.subr.mxu0 0.0
        %783 = vmatpush1.xpose.msra.mxu0 0.0
        %784 = vmatprep.subr.mxu0 0.0
        %785 = vmatpush1.xpose.msra.mxu0 0.0
        %786 = vmatprep.subr.mxu0 0.0
        %787 = vmatpush1.xpose.msra.mxu0 %v754
        %788 = vmatprep.subr.mxu0 0.0
        %789 = vmatpush2.xpose.msra.mxu0 0.0
        %790 = vmatprep.subr.mxu0 0.0
        %791 = vmatpush2.xpose.msra.mxu0 0.0
        %792 = vmatprep.subr.mxu0 0.0
        %793 = vmatpush2.xpose.msra.mxu0 0.0
        %794 = vmatprep.subr.mxu0 0.0
        %795 = vmatpush2.xpose.msra.mxu0 0.0
        %796 = vmatprep.subr.mxu0 0.0
        %797 = vmatpush2.xpose.msra.mxu0 0.0
        %798 = vmatprep.subr.mxu0 0.0
        %799 = vmatpush2.xpose.msra.mxu0 0.0
        %800 = vmatprep.subr.mxu0 0.0
        %801 = vmatpush2.xpose.msra.mxu0 0.0
        %802 = vmatprep.subr.mxu0 0.0
        %803 = vmatpush2.xpose.msra.mxu0 0.0
        %804 = vmatprep.subr.mxu0 0.0
        %805 = vmatpush2.xpose.msra.mxu0 0.0
        %806 = vmatprep.subr.mxu0 0.0
        %807 = vmatpush2.xpose.msra.mxu0 0.0
        %808 = vmatprep.subr.mxu0 0.0
        %809 = vmatpush2.xpose.msra.mxu0 0.0
        %810 = vmatprep.subr.mxu0 0.0
        %811 = vmatpush2.xpose.msra.mxu0 0.0
        %812 = vmatprep.subr.mxu0 0.0
        %813 = vmatpush2.xpose.msra.mxu0 0.0
        %814 = vmatprep.subr.mxu0 0.0
        %815 = vmatpush2.xpose.msra.mxu0 0.0
        %816 = vmatprep.subr.mxu0 0.0
        %817 = vmatpush2.xpose.msra.mxu0 0.0
        %818 = vmatprep.subr.mxu0 0.0
        %819 = vmatpush2.xpose.msra.mxu0 0.0
        %820 = vmatprep.mubr.f32.mxu0 0.0
        %821 = vmatmul.mubr.f32.gmra.mxu0 %v752
        %v822 = vpop.f32.mrf.mxu0
        %v823 = vadd.f32 0.0, %v822
        %v824 = vpop.f32.mrf.mxu0
        %825 = vdwg.mxu0
        %v826 = vmul.f32 %v823, 0.35355338
        %v827 = vsel %vm586, %v826, -inf
        %828 = vmax.xlane.f32.xlu0 %v827
        %v829 = vpop.xlane.xlu0 %828
        %v830 = vsub.f32 %v826, %v829
        %v831 = vmul.f32 %v830, 1.442695
        %v832 = vpow.pop %v831
        %v833 = vsel %vm586, %v832, 0.0
        %834 = vadd.xlane.f32.xlu0 %v833
        %v835 = vpop.xlane.xlu0 %834
        %v836 = vrcp.pop %v835
        %v837 = vmul.f32 %v832, %v836
        %839 = vrot.lane.b32.xlu0 %v583, 120
        %v840 = vpop.permute.xlu0 %839
        %v843 = vsel %vm586, %v837, 0
        %845 = vmatprep.subr.mxu0 0.0
        %846 = vmatpush1.msra.mxu0 0.0
        %847 = vmatprep.subr.mxu0 0.0
        %848 = vmatpush1.msra.mxu0 0.0
        %849 = vmatprep.subr.mxu0 0.0
        %850 = vmatpush1.msra.mxu0 0.0
        %851 = vmatprep.subr.mxu0 0.0
        %852 = vmatpush1.msra.mxu0 0.0
        %853 = vmatprep.subr.mxu0 0.0
        %854 = vmatpush1.msra.mxu0 0.0
        %855 = vmatprep.subr.mxu0 0.0
        %856 = vmatpush1.msra.mxu0 0.0
        %857 = vmatprep.subr.mxu0 0.0
        %858 = vmatpush1.msra.mxu0 0.0
        %859 = vmatprep.subr.mxu0 0.0
        %860 = vmatpush1.msra.mxu0 0.0
        %861 = vmatprep.subr.mxu0 0.0
        %862 = vmatpush1.msra.mxu0 0.0
        %863 = vmatprep.subr.mxu0 0.0
        %864 = vmatpush1.msra.mxu0 0.0
        %865 = vmatprep.subr.mxu0 0.0
        %866 = vmatpush1.msra.mxu0 0.0
        %867 = vmatprep.subr.mxu0 0.0
        %868 = vmatpush1.msra.mxu0 0.0
        %869 = vmatprep.subr.mxu0 0.0
        %870 = vmatpush1.msra.mxu0 0.0
        %871 = vmatprep.subr.mxu0 0.0
        %872 = vmatpush1.msra.mxu0 0.0
        %873 = vmatprep.subr.mxu0 0.0
        %874 = vmatpush1.msra.mxu0 0.0
        %875 = vmatprep.subr.mxu0 0.0
        %876 = vmatpush1.msra.mxu0 %v840
        %877 = vmatprep.subr.mxu0 0.0
        %878 = vmatpush2.msra.mxu0 0.0
        %879 = vmatprep.subr.mxu0 0.0
        %880 = vmatpush2.msra.mxu0 0.0
        %881 = vmatprep.subr.mxu0 0.0
        %882 = vmatpush2.msra.mxu0 0.0
        %883 = vmatprep.subr.mxu0 0.0
        %884 = vmatpush2.msra.mxu0 0.0
        %885 = vmatprep.subr.mxu0 0.0
        %886 = vmatpush2.msra.mxu0 0.0
        %887 = vmatprep.subr.mxu0 0.0
        %888 = vmatpush2.msra.mxu0 0.0
        %889 = vmatprep.subr.mxu0 0.0
        %890 = vmatpush2.msra.mxu0 0.0
        %891 = vmatprep.subr.mxu0 0.0
        %892 = vmatpush2.msra.mxu0 0.0
        %893 = vmatprep.subr.mxu0 0.0
        %894 = vmatpush2.msra.mxu0 0.0
        %895 = vmatprep.subr.mxu0 0.0
        %896 = vmatpush2.msra.mxu0 0.0
        %897 = vmatprep.subr.mxu0 0.0
        %898 = vmatpush2.msra.mxu0 0.0
        %899 = vmatprep.subr.mxu0 0.0
        %900 = vmatpush2.msra.mxu0 0.0
        %901 = vmatprep.subr.mxu0 0.0
        %902 = vmatpush2.msra.mxu0 0.0
        %903 = vmatprep.subr.mxu0 0.0
        %904 = vmatpush2.msra.mxu0 0.0
        %905 = vmatprep.subr.mxu0 0.0
        %906 = vmatpush2.msra.mxu0 0.0
        %907 = vmatprep.subr.mxu0 0.0
        %908 = vmatpush2.msra.mxu0 0.0
        %909 = vmatprep.mubr.f32.mxu0 0.0
        %910 = vmatmul.mubr.f32.gmra.mxu0 %v843
        %v911 = vpop.f32.mrf.mxu0
        %v912 = vadd.f32 0.0, %v911
        %v913 = vpop.f32.mrf.mxu0
        %914 = vdwg.mxu0
        %915 = vrot.lane.b32.xlu0 %v431, 112
        %v916 = vpop.permute.xlu0 %915
        %917 = vrot.lane.b32.xlu0 %v507, 112
        %v918 = vpop.permute.xlu0 %917
        %v919 = vsel %vm586, %v916, 0
        %v921 = vsel %vm586, %v918, 0
        %923 = vmatprep.subr.mxu0 0.0
        %924 = vmatpush1.xpose.msra.mxu0 0.0
        %925 = vmatprep.subr.mxu0 0.0
        %926 = vmatpush1.xpose.msra.mxu0 0.0
        %927 = vmatprep.subr.mxu0 0.0
        %928 = vmatpush1.xpose.msra.mxu0 0.0
        %929 = vmatprep.subr.mxu0 0.0
        %930 = vmatpush1.xpose.msra.mxu0 0.0
        %931 = vmatprep.subr.mxu0 0.0
        %932 = vmatpush1.xpose.msra.mxu0 0.0
        %933 = vmatprep.subr.mxu0 0.0
        %934 = vmatpush1.xpose.msra.mxu0 0.0
        %935 = vmatprep.subr.mxu0 0.0
        %936 = vmatpush1.xpose.msra.mxu0 0.0
        %937 = vmatprep.subr.mxu0 0.0
        %938 = vmatpush1.xpose.msra.mxu0 0.0
        %939 = vmatprep.subr.mxu0 0.0
        %940 = vmatpush1.xpose.msra.mxu0 0.0
        %941 = vmatprep.subr.mxu0 0.0
        %942 = vmatpush1.xpose.msra.mxu0 0.0
        %943 = vmatprep.subr.mxu0 0.0
        %944 = vmatpush1.xpose.msra.mxu0 0.0
        %945 = vmatprep.subr.mxu0 0.0
        %946 = vmatpush1.xpose.msra.mxu0 0.0
        %947 = vmatprep.subr.mxu0 0.0
        %948 = vmatpush1.xpose.msra.mxu0 0.0
        %949 = vmatprep.subr.mxu0 0.0
        %950 = vmatpush1.xpose.msra.mxu0 0.0
        %951 = vmatprep.subr.mxu0 0.0
        %952 = vmatpush1.xpose.msra.mxu0 0.0
        %953 = vmatprep.subr.mxu0 0.0
        %954 = vmatpush1.xpose.msra.mxu0 %v921
        %955 = vmatprep.subr.mxu0 0.0
        %956 = vmatpush2.xpose.msra.mxu0 0.0
        %957 = vmatprep.subr.mxu0 0.0
        %958 = vmatpush2.xpose.msra.mxu0 0.0
        %959 = vmatprep.subr.mxu0 0.0
        %960 = vmatpush2.xpose.msra.mxu0 0.0
        %961 = vmatprep.subr.mxu0 0.0
        %962 = vmatpush2.xpose.msra.mxu0 0.0
        %963 = vmatprep.subr.mxu0 0.0
        %964 = vmatpush2.xpose.msra.mxu0 0.0
        %965 = vmatprep.subr.mxu0 0.0
        %966 = vmatpush2.xpose.msra.mxu0 0.0
        %967 = vmatprep.subr.mxu0 0.0
        %968 = vmatpush2.xpose.msra.mxu0 0.0
        %969 = vmatprep.subr.mxu0 0.0
        %970 = vmatpush2.xpose.msra.mxu0 0.0
        %971 = vmatprep.subr.mxu0 0.0
        %972 = vmatpush2.xpose.msra.mxu0 0.0
        %973 = vmatprep.subr.mxu0 0.0
        %974 = vmatpush2.xpose.msra.mxu0 0.0
        %975 = vmatprep.subr.mxu0 0.0
        %976 = vmatpush2.xpose.msra.mxu0 0.0
        %977 = vmatprep.subr.mxu0 0.0
        %978 = vmatpush2.xpose.msra.mxu0 0.0
        %979 = vmatprep.subr.mxu0 0.0
        %980 = vmatpush2.xpose.msra.mxu0 0.0
        %981 = vmatprep.subr.mxu0 0.0
        %982 = vmatpush2.xpose.msra.mxu0 0.0
        %983 = vmatprep.subr.mxu0 0.0
        %984 = vmatpush2.xpose.msra.mxu0 0.0
        %985 = vmatprep.subr.mxu0 0.0
        %986 = vmatpush2.xpose.msra.mxu0 0.0
        %987 = vmatprep.mubr.f32.mxu0 0.0
        %988 = vmatmul.mubr.f32.gmra.mxu0 %v919
        %v989 = vpop.f32.mrf.mxu0
        %v990 = vadd.f32 0.0, %v989
        %v991 = vpop.f32.mrf.mxu0
        %992 = vdwg.mxu0
        %v993 = vmul.f32 %v990, 0.35355338
        %v994 = vsel %vm586, %v993, -inf
        %995 = vmax.xlane.f32.xlu0 %v994
        %v996 = vpop.xlane.xlu0 %995
        %v997 = vsub.f32 %v993, %v996
        %v998 = vmul.f32 %v997, 1.442695
        %v999 = vpow.pop %v998
        %v1000 = vsel %vm586, %v999, 0.0
        %1001 = vadd.xlane.f32.xlu0 %v1000
        %v1002 = vpop.xlane.xlu0 %1001
        %v1003 = vrcp.pop %v1002
        %v1004 = vmul.f32 %v999, %v1003
        %1005 = vrot.lane.b32.xlu0 %v583, 112
        %v1006 = vpop.permute.xlu0 %1005
        %v1009 = vsel %vm586, %v1004, 0
        %1011 = vmatprep.subr.mxu0 0.0
        %1012 = vmatpush1.msra.mxu0 0.0
        %1013 = vmatprep.subr.mxu0 0.0
        %1014 = vmatpush1.msra.mxu0 0.0
        %1015 = vmatprep.subr.mxu0 0.0
        %1016 = vmatpush1.msra.mxu0 0.0
        %1017 = vmatprep.subr.mxu0 0.0
        %1018 = vmatpush1.msra.mxu0 0.0
        %1019 = vmatprep.subr.mxu0 0.0
        %1020 = vmatpush1.msra.mxu0 0.0
        %1021 = vmatprep.subr.mxu0 0.0
        %1022 = vmatpush1.msra.mxu0 0.0
        %1023 = vmatprep.subr.mxu0 0.0
        %1024 = vmatpush1.msra.mxu0 0.0
        %1025 = vmatprep.subr.mxu0 0.0
        %1026 = vmatpush1.msra.mxu0 0.0
        %1027 = vmatprep.subr.mxu0 0.0
        %1028 = vmatpush1.msra.mxu0 0.0
        %1029 = vmatprep.subr.mxu0 0.0
        %1030 = vmatpush1.msra.mxu0 0.0
        %1031 = vmatprep.subr.mxu0 0.0
        %1032 = vmatpush1.msra.mxu0 0.0
        %1033 = vmatprep.subr.mxu0 0.0
        %1034 = vmatpush1.msra.mxu0 0.0
        %1035 = vmatprep.subr.mxu0 0.0
        %1036 = vmatpush1.msra.mxu0 0.0
        %1037 = vmatprep.subr.mxu0 0.0
        %1038 = vmatpush1.msra.mxu0 0.0
        %1039 = vmatprep.subr.mxu0 0.0
        %1040 = vmatpush1.msra.mxu0 0.0
        %1041 = vmatprep.subr.mxu0 0.0
        %1042 = vmatpush1.msra.mxu0 %v1006
        %1043 = vmatprep.subr.mxu0 0.0
        %1044 = vmatpush2.msra.mxu0 0.0
        %1045 = vmatprep.subr.mxu0 0.0
        %1046 = vmatpush2.msra.mxu0 0.0
        %1047 = vmatprep.subr.mxu0 0.0
        %1048 = vmatpush2.msra.mxu0 0.0
        %1049 = vmatprep.subr.mxu0 0.0
        %1050 = vmatpush2.msra.mxu0 0.0
        %1051 = vmatprep.subr.mxu0 0.0
        %1052 = vmatpush2.msra.mxu0 0.0
        %1053 = vmatprep.subr.mxu0 0.0
        %1054 = vmatpush2.msra.mxu0 0.0
        %1055 = vmatprep.subr.mxu0 0.0
        %1056 = vmatpush2.msra.mxu0 0.0
        %1057 = vmatprep.subr.mxu0 0.0
        %1058 = vmatpush2.msra.mxu0 0.0
        %1059 = vmatprep.subr.mxu0 0.0
        %1060 = vmatpush2.msra.mxu0 0.0
        %1061 = vmatprep.subr.mxu0 0.0
        %1062 = vmatpush2.msra.mxu0 0.0
        %1063 = vmatprep.subr.mxu0 0.0
        %1064 = vmatpush2.msra.mxu0 0.0
        %1065 = vmatprep.subr.mxu0 0.0
        %1066 = vmatpush2.msra.mxu0 0.0
        %1067 = vmatprep.subr.mxu0 0.0
        %1068 = vmatpush2.msra.mxu0 0.0
        %1069 = vmatprep.subr.mxu0 0.0
        %1070 = vmatpush2.msra.mxu0 0.0
        %1071 = vmatprep.subr.mxu0 0.0
        %1072 = vmatpush2.msra.mxu0 0.0
        %1073 = vmatprep.subr.mxu0 0.0
        %1074 = vmatpush2.msra.mxu0 0.0
        %1075 = vmatprep.mubr.f32.mxu0 0.0
        %1076 = vmatmul.mubr.f32.gmra.mxu0 %v1009
        %v1077 = vpop.f32.mrf.mxu0
        %v1078 = vadd.f32 0.0, %v1077
        %v1079 = vpop.f32.mrf.mxu0
        %1080 = vdwg.mxu0
        %1081 = vrot.lane.b32.xlu0 %v431, 104
        %v1082 = vpop.permute.xlu0 %1081
        %1083 = vrot.lane.b32.xlu0 %v507, 104
        %v1084 = vpop.permute.xlu0 %1083
        %v1085 = vsel %vm586, %v1082, 0
        %v1087 = vsel %vm586, %v1084, 0
        %1089 = vmatprep.subr.mxu0 0.0
        %1090 = vmatpush1.xpose.msra.mxu0 0.0
        %1091 = vmatprep.subr.mxu0 0.0
        %1092 = vmatpush1.xpose.msra.mxu0 0.0
        %1093 = vmatprep.subr.mxu0 0.0
        %1094 = vmatpush1.xpose.msra.mxu0 0.0
        %1095 = vmatprep.subr.mxu0 0.0
        %1096 = vmatpush1.xpose.msra.mxu0 0.0
        %1097 = vmatprep.subr.mxu0 0.0
        %1098 = vmatpush1.xpose.msra.mxu0 0.0
        %1099 = vmatprep.subr.mxu0 0.0
        %1100 = vmatpush1.xpose.msra.mxu0 0.0
        %1101 = vmatprep.subr.mxu0 0.0
        %1102 = vmatpush1.xpose.msra.mxu0 0.0
        %1103 = vmatprep.subr.mxu0 0.0
        %1104 = vmatpush1.xpose.msra.mxu0 0.0
        %1105 = vmatprep.subr.mxu0 0.0
        %1106 = vmatpush1.xpose.msra.mxu0 0.0
        %1107 = vmatprep.subr.mxu0 0.0
        %1108 = vmatpush1.xpose.msra.mxu0 0.0
        %1109 = vmatprep.subr.mxu0 0.0
        %1110 = vmatpush1.xpose.msra.mxu0 0.0
        %1111 = vmatprep.subr.mxu0 0.0
        %1112 = vmatpush1.xpose.msra.mxu0 0.0
        %1113 = vmatprep.subr.mxu0 0.0
        %1114 = vmatpush1.xpose.msra.mxu0 0.0
        %1115 = vmatprep.subr.mxu0 0.0
        %1116 = vmatpush1.xpose.msra.mxu0 0.0
        %1117 = vmatprep.subr.mxu0 0.0
        %1118 = vmatpush1.xpose.msra.mxu0 0.0
        %1119 = vmatprep.subr.mxu0 0.0
        %1120 = vmatpush1.xpose.msra.mxu0 %v1087
        %1121 = vmatprep.subr.mxu0 0.0
        %1122 = vmatpush2.xpose.msra.mxu0 0.0
        %1123 = vmatprep.subr.mxu0 0.0
        %1124 = vmatpush2.xpose.msra.mxu0 0.0
        %1125 = vmatprep.subr.mxu0 0.0
        %1126 = vmatpush2.xpose.msra.mxu0 0.0
        %1127 = vmatprep.subr.mxu0 0.0
        %1128 = vmatpush2.xpose.msra.mxu0 0.0
        %1129 = vmatprep.subr.mxu0 0.0
        %1130 = vmatpush2.xpose.msra.mxu0 0.0
        %1131 = vmatprep.subr.mxu0 0.0
        %1132 = vmatpush2.xpose.msra.mxu0 0.0
        %1133 = vmatprep.subr.mxu0 0.0
        %1134 = vmatpush2.xpose.msra.mxu0 0.0
        %1135 = vmatprep.subr.mxu0 0.0
        %1136 = vmatpush2.xpose.msra.mxu0 0.0
        %1137 = vmatprep.subr.mxu0 0.0
        %1138 = vmatpush2.xpose.msra.mxu0 0.0
        %1139 = vmatprep.subr.mxu0 0.0
        %1140 = vmatpush2.xpose.msra.mxu0 0.0
        %1141 = vmatprep.subr.mxu0 0.0
        %1142 = vmatpush2.xpose.msra.mxu0 0.0
        %1143 = vmatprep.subr.mxu0 0.0
        %1144 = vmatpush2.xpose.msra.mxu0 0.0
        %1145 = vmatprep.subr.mxu0 0.0
        %1146 = vmatpush2.xpose.msra.mxu0 0.0
        %1147 = vmatprep.subr.mxu0 0.0
        %1148 = vmatpush2.xpose.msra.mxu0 0.0
        %1149 = vmatprep.subr.mxu0 0.0
        %1150 = vmatpush2.xpose.msra.mxu0 0.0
        %1151 = vmatprep.subr.mxu0 0.0
        %1152 = vmatpush2.xpose.msra.mxu0 0.0
        %1153 = vmatprep.mubr.f32.mxu0 0.0
        %1154 = vmatmul.mubr.f32.gmra.mxu0 %v1085
        %v1155 = vpop.f32.mrf.mxu0
        %v1156 = vadd.f32 0.0, %v1155
        %v1157 = vpop.f32.mrf.mxu0
        %1158 = vdwg.mxu0
        %v1159 = vmul.f32 %v1156, 0.35355338
        %v1160 = vsel %vm586, %v1159, -inf
        %1161 = vmax.xlane.f32.xlu0 %v1160
        %v1162 = vpop.xlane.xlu0 %1161
        %v1163 = vsub.f32 %v1159, %v1162
        %v1164 = vmul.f32 %v1163, 1.442695
        %v1165 = vpow.pop %v1164
        %v1166 = vsel %vm586, %v1165, 0.0
        %1167 = vadd.xlane.f32.xlu0 %v1166
        %v1168 = vpop.xlane.xlu0 %1167
        %v1169 = vrcp.pop %v1168
        %v1170 = vmul.f32 %v1165, %v1169
        %1171 = vrot.lane.b32.xlu0 %v583, 104
        %v1172 = vpop.permute.xlu0 %1171
        %v1175 = vsel %vm586, %v1170, 0
        %1177 = vmatprep.subr.mxu0 0.0
        %1178 = vmatpush1.msra.mxu0 0.0
        %1179 = vmatprep.subr.mxu0 0.0
        %1180 = vmatpush1.msra.mxu0 0.0
        %1181 = vmatprep.subr.mxu0 0.0
        %1182 = vmatpush1.msra.mxu0 0.0
        %1183 = vmatprep.subr.mxu0 0.0
        %1184 = vmatpush1.msra.mxu0 0.0
        %1185 = vmatprep.subr.mxu0 0.0
        %1186 = vmatpush1.msra.mxu0 0.0
        %1187 = vmatprep.subr.mxu0 0.0
        %1188 = vmatpush1.msra.mxu0 0.0
        %1189 = vmatprep.subr.mxu0 0.0
        %1190 = vmatpush1.msra.mxu0 0.0
        %1191 = vmatprep.subr.mxu0 0.0
        %1192 = vmatpush1.msra.mxu0 0.0
        %1193 = vmatprep.subr.mxu0 0.0
        %1194 = vmatpush1.msra.mxu0 0.0
        %1195 = vmatprep.subr.mxu0 0.0
        %1196 = vmatpush1.msra.mxu0 0.0
        %1197 = vmatprep.subr.mxu0 0.0
        %1198 = vmatpush1.msra.mxu0 0.0
        %1199 = vmatprep.subr.mxu0 0.0
        %1200 = vmatpush1.msra.mxu0 0.0
        %1201 = vmatprep.subr.mxu0 0.0
        %1202 = vmatpush1.msra.mxu0 0.0
        %1203 = vmatprep.subr.mxu0 0.0
        %1204 = vmatpush1.msra.mxu0 0.0
        %1205 = vmatprep.subr.mxu0 0.0
        %1206 = vmatpush1.msra.mxu0 0.0
        %1207 = vmatprep.subr.mxu0 0.0
        %1208 = vmatpush1.msra.mxu0 %v1172
        %1209 = vmatprep.subr.mxu0 0.0
        %1210 = vmatpush2.msra.mxu0 0.0
        %1211 = vmatprep.subr.mxu0 0.0
        %1212 = vmatpush2.msra.mxu0 0.0
        %1213 = vmatprep.subr.mxu0 0.0
        %1214 = vmatpush2.msra.mxu0 0.0
        %1215 = vmatprep.subr.mxu0 0.0
        %1216 = vmatpush2.msra.mxu0 0.0
        %1217 = vmatprep.subr.mxu0 0.0
        %1218 = vmatpush2.msra.mxu0 0.0
        %1219 = vmatprep.subr.mxu0 0.0
        %1220 = vmatpush2.msra.mxu0 0.0
        %1221 = vmatprep.subr.mxu0 0.0
        %1222 = vmatpush2.msra.mxu0 0.0
        %1223 = vmatprep.subr.mxu0 0.0
        %1224 = vmatpush2.msra.mxu0 0.0
        %1225 = vmatprep.subr.mxu0 0.0
        %1226 = vmatpush2.msra.mxu0 0.0
        %1227 = vmatprep.subr.mxu0 0.0
        %1228 = vmatpush2.msra.mxu0 0.0
        %1229 = vmatprep.subr.mxu0 0.0
        %1230 = vmatpush2.msra.mxu0 0.0
        %1231 = vmatprep.subr.mxu0 0.0
        %1232 = vmatpush2.msra.mxu0 0.0
        %1233 = vmatprep.subr.mxu0 0.0
        %1234 = vmatpush2.msra.mxu0 0.0
        %1235 = vmatprep.subr.mxu0 0.0
        %1236 = vmatpush2.msra.mxu0 0.0
        %1237 = vmatprep.subr.mxu0 0.0
        %1238 = vmatpush2.msra.mxu0 0.0
        %1239 = vmatprep.subr.mxu0 0.0
        %1240 = vmatpush2.msra.mxu0 0.0
        %1241 = vmatprep.mubr.f32.mxu0 0.0
        %1242 = vmatmul.mubr.f32.gmra.mxu0 %v1175
        %v1243 = vpop.f32.mrf.mxu0
        %v1244 = vadd.f32 0.0, %v1243
        %v1245 = vpop.f32.mrf.mxu0
        %1246 = vdwg.mxu0
        %1248 = vrot.lane.b32.xlu0 %v912, 8
        %v1249 = vpop.permute.xlu0 %1248
        %1252 = vrot.lane.b32.xlu0 %v1078, 16
        %v1253 = vpop.permute.xlu0 %1252
        %1256 = vrot.lane.b32.xlu0 %v1244, 24
        %v1257 = vpop.permute.xlu0 %1256
        %v1259 = vsel %vm586, %v745, %v1249
        %vm1260 = vcmask 130048
        %v1261 = vsel %vm1260, %v1259, %v1253
        %vm1262 = vcmask 195584
        %v1263 = vsel %vm1262, %v1261, %v1257
        %1264 = vst.msk [vmem:[%s337] sm:$0xff] %vm360, %v1263
        %s1265 = sand.u32 %s186, 1
        %s1266 = scalar_lea.sflag [#allocation4], %s1265
        %s1267 = sand.u32 %s186, 1
        %s1268 = smul.addr %s1267, 8
        %s1269 = scalar_lea.vmem [#allocation10], %s1268
        // Predicated region
        $region65: #{tpu_custom_call.1} parent=47 // pred_check
          %p1270 = pneg %p196
        $region66: #{tpu_custom_call.1} parent=47 // pred_check_branch
          %1272 = sbr.rel (%p1270) target = $region68
        $region67: #{tpu_custom_call.1} parent=47 // pred_region
          %s1274 = ssub.s32 128, 128
          %1275 = vsyncadd %s1266, %s1274
          %s1276 = smul.addr %s26, 128
          %s1277 = scalar_lea.hbm %s7, %s1276
          %s1279 = sshll.u32 %s1269, 4
          %s1280 = int_to_ptr.vmem [resolvable:$true] %s1279
          %1282 = dma.vmem_to_hbm [thread:$0]  %s1280, 128, %s1277, %s1266
        $region68: #{tpu_custom_call.1} parent=47 // pred_fallthru
          _
      $region48: #{tpu_custom_call.1} parent=5 // pred_fallthru
        _
      %p1283 = scmp.le.s32.totalorder 2, %s21
      // Predicated region
      $region69: #{tpu_custom_call.1} parent=5 // pred_check
        %p1284 = pneg %p1283
      $region70: #{tpu_custom_call.1} parent=5 // pred_check_branch
        %1286 = sbr.rel (%p1284) target = $region72
      $region71: #{tpu_custom_call.1} parent=5 // pred_region
        %s1287 = ssub.s32 %s21, 2
        // Predicated region
        $region73: #{tpu_custom_call.1} parent=71 // pred_check
          %p1288 = pneg %p202
        $region74: #{tpu_custom_call.1} parent=71 // pred_check_branch
          %1290 = sbr.rel (%p1288) target = $region76
        $region75: #{tpu_custom_call.1} parent=71 // pred_region
          %s1291 = sand.u32 %s187, 1
          %s1292 = scalar_lea.sflag [#allocation4], %s1291
          %s1293 = sand.u32 %s187, 1
          %s1294 = smul.addr %s1293, 8
          %s1295 = scalar_lea.vmem [#allocation10], %s1294
          %1296 = dma.done %s1292, 128
        $region76: #{tpu_custom_call.1} parent=71 // pred_fallthru
          _
      $region72: #{tpu_custom_call.1} parent=5 // pred_fallthru
        _
    $region6: #{tpu_custom_call.1} parent=1 // loop_footer
      %s25 = sadd.s32 1, %s21
    $region7: #{tpu_custom_call.1} parent=1 // loop_footer_branch
      %20 = sbr.rel target = $region3
    $region8: #{tpu_custom_call.1} parent=1 // loop_exit
      _
    %1297 = vsyncpa [#allocation3], 1
    %s1298 = scalar_lea.sflag [#allocation3], 1
    %1299 = vsyncpa %s1298, 1
    %1300 = vsyncpa [#allocation6], 1
    %1301 = vsyncpa [#allocation9], 1
    %1302 = vsyncpa [#allocation4], 1
    %s1303 = scalar_lea.sflag [#allocation4], 1
    %1304 = vsyncpa %s1303, 1

</llo_original>
